<compile_context>
chip_gen: v7x
topology: tpu7x:2x2x1
jax: 0.10.0
libtpu: 0.0.40
codegen_flags: <defaults>
</compile_context>

<pallas_src>
import functools

import jax
import jax.numpy as jnp
from jax.experimental import pallas as pl
from jax.experimental.pallas import tpu as pltpu

_BF16 = jnp.bfloat16
_F32 = jnp.float32


# -----------------------------------------------------------------------------
# Kernel
# -----------------------------------------------------------------------------
def encoder_layer_kernel(
    x_ref,                        # (Bt, S, D)        fp32 activations
    wqkv_ref, bqkv_ref,           # (3H, D, hd) bf16 / (3H, 1, hd) fp32 (head-grouped, q pre-scaled)
    wo_ref, bo_ref,               # (D, D)  bf16 / (1, D) fp32
    w1_ref, b1_ref,               # (D, F)  bf16 / (1, F) fp32
    w2_ref, b2_ref,               # (F, D)  bf16 / (1, D) fp32
    g1_ref, be1_ref, g2_ref, be2_ref,     # (1, D) fp32 layer-norm params
    y_ref,                        # (Bt, S, D) fp32
    *opt_refs,                    # optional: attnw_ref (Bt, S, S) fp32
    nhead: int, eps: float, need_weights: bool, approx_recip: bool,
):
    Bt, S, D = x_ref.shape
    H = nhead
    hd = D // H
    n = Bt * S

    x = x_ref[...]                                   # (Bt, S, D) fp32
    x2d = x.reshape(n, D)
    x_bf = x2d.astype(_BF16)

    # ---- head-grouped QKV in-projection -------------------------------------
    # One (n, D) @ (D, hd) MXU matmul per (q|k|v, head) group; the head index is a
    # leading-axis index of the weight ref, so there is NO sub-128-lane slicing of
    # the activations.  The 1/sqrt(hd) query scale is folded into wqkv/bqkv at
    # weight-prep time.  (For hd that is a multiple of 128 a fused (D, 3D) matmul
    # with aligned lane slices would fill the MXU better.)
    def proj_group(g):
        z = jnp.dot(x_bf, wqkv_ref[g], preferred_element_type=_F32) + bqkv_ref[g]
        return z.astype(_BF16).reshape(Bt, S, hd)    # bf16 once, right here

    q_g = jnp.concatenate([proj_group(h) for h in range(H)], axis=0)           # (H*Bt, S, hd)
    k_g = jnp.concatenate([proj_group(H + h) for h in range(H)], axis=0)
    v_g = jnp.concatenate([proj_group(2 * H + h) for h in range(H)], axis=0)

    # ---- attention: one batched matmul over all (head, batch) pairs ----------
    s = jnp.einsum("gqd,gkd->gqk", q_g, k_g, preferred_element_type=_F32)      # (G, S, S)
    s = s - jnp.max(s, axis=-1, keepdims=True)
    e = jnp.exp(s)
    denom = jnp.sum(e, axis=-1, keepdims=True)
    if approx_recip:
        p = e * pl.reciprocal(denom, approx=True)    # EUP slot (~free)
    else:
        p = e / denom                                # exact: rows sum to 1

    if need_weights:
        # head-averaged attention weights (need_weights=True, average_attn_weights)
        attnw_ref = opt_refs[0]
        attnw_ref[...] = jnp.mean(p.reshape(H, Bt, S, S), axis=0).astype(attnw_ref.dtype)

    og = jnp.einsum("gqk,gkd->gqd", p.astype(_BF16), v_g,
                    preferred_element_type=_F32)                               # (G, S, hd)

    # ---- output projection: one full-K (n, D) @ (D, D) MXU matmul ------------
    heads = [og[h * Bt:(h + 1) * Bt].reshape(n, hd).astype(_BF16) for h in range(H)]
    attn_cat = jnp.concatenate(heads, axis=-1)                                 # (n, D)
    attn = jnp.dot(attn_cat, wo_ref[...], preferred_element_type=_F32) + bo_ref[...]

    def layer_norm(z, g, b):
        mu = jnp.mean(z, axis=-1, keepdims=True)
        var = jnp.mean(jnp.square(z - mu), axis=-1, keepdims=True)
        return (z - mu) * jax.lax.rsqrt(var + eps) * g + b

    # ---- residual + norm1 (fp32) ---------------------------------------------
    x1 = layer_norm(x2d + attn, g1_ref[...], be1_ref[...])

    # ---- feed-forward: linear2(relu(linear1(x))) ------------------------------
    h1 = jnp.dot(x1.astype(_BF16), w1_ref[...], preferred_element_type=_F32) + b1_ref[...]
    h1 = jnp.maximum(h1, 0.0)                                                  # relu
    ff = jnp.dot(h1.astype(_BF16), w2_ref[...], preferred_element_type=_F32) + b2_ref[...]

    # ---- residual + norm2 (fp32) ----------------------------------------------
    y = layer_norm(x1 + ff, g2_ref[...], be2_ref[...])
    y_ref[...] = y.reshape(Bt, S, D).astype(y_ref.dtype)


# -----------------------------------------------------------------------------
# Helpers
# -----------------------------------------------------------------------------
def _probe_kernel(a_ref, o_ref):
    o_ref[...] = a_ref[...]


@functools.lru_cache(maxsize=1)
def _single_buffered_weights_supported():
    """Probe once whether pipeline_mode=pl.Buffered(1) lowers on this JAX/TPU."""
    try:
        fn = pl.pallas_call(
            _probe_kernel,
            out_shape=jax.ShapeDtypeStruct((8, 128), _F32),
            grid=(1,),
            in_specs=[pl.BlockSpec((8, 128), lambda i: (0, 0),
                                   pipeline_mode=pl.Buffered(1))],
            out_specs=pl.BlockSpec((8, 128), lambda i: (0, 0)),
        )
        jax.block_until_ready(fn(jnp.zeros((8, 128), _F32)))
        return True
    except Exception:
        return False


def _vmem_budget_bytes():
    """Generation-aware VMEM budget: ~3/4 of physical capacity.

    v5e/v6e (128 MiB) -> 96 MiB, v7x (64 MiB) -> 48 MiB.
    """
    cap = 64 * 1024 * 1024
    try:
        cap = int(pltpu.get_tpu_info().vmem_capacity_bytes)
    except Exception:
        pass
    return int(max(32 * 1024 * 1024, min(cap * 3 // 4, 112 * 1024 * 1024)))


def _per_batch_vmem_bytes(S, D, F, H, need_weights):
    """Rough per-batch-element VMEM footprint of one grid step (bytes)."""
    sd, ss, sf = S * D, S * S, S * F
    b = 2 * (2 * sd * 4)                     # x in / y out blocks (double-buffered)
    b += sd * (2 + 3 * 6)                    # x_bf + q/k/v (fp32 accum + bf16 copies)
    b += H * ss * (4 + 4 + 2)                # scores, exp, p(bf16)
    b += sd * (4 + 2 + 4 + 4 + 4 + 4)        # og, cat, attn, x1, ff, y
    b += sf * (4 + 2)                        # ffn hidden (fp32 + bf16)
    if need_weights:
        b += 2 * ss * 4 + ss * 4             # attnw out block (dbl) + head-mean temp
    return int(b)


def prepare_params(params, *, nhead):
    """One-time weight fusion / re-layout / bf16 cast, hoisted out of forward.

    Cache the result across forward calls / layers: re-running these concats,
    transposes and casts every step is pure HBM-round-trip waste.
    """
    D = params["wq"].shape[0]
    hd = D // nhead
    scale = 1.0 / float(hd) ** 0.5

    def w_groups(w):                          # (D_out, D_in) -> (nhead, D_in, hd)
        return jnp.transpose(w.reshape(nhead, hd, D), (0, 2, 1))

    def b_groups(b):                          # (1, D) -> (nhead, 1, hd)
        return b.reshape(nhead, 1, hd)

    # Fold the 1/sqrt(hd) query scale into wq / bq (exactly matches PyTorch's q scaling).
    wqkv = jnp.concatenate(
        [w_groups(params["wq"] * scale), w_groups(params["wk"]), w_groups(params["wv"])],
        axis=0).astype(_BF16)                                     # (3H, D, hd)
    bqkv = jnp.concatenate(
        [b_groups(params["bq"] * scale), b_groups(params["bk"]), b_groups(params["bv"])],
        axis=0).astype(_F32)                                      # (3H, 1, hd)

    return {
        "wqkv": wqkv, "bqkv": bqkv,
        "wo_t": params["wo"].T.astype(_BF16), "bo": params["bo"].astype(_F32),
        "w1_t": params["w1"].T.astype(_BF16), "b1": params["b1"].astype(_F32),
        "w2_t": params["w2"].T.astype(_BF16), "b2": params["b2"].astype(_F32),
        "g1": params["g1"].astype(_F32), "be1": params["be1"].astype(_F32),
        "g2": params["g2"].astype(_F32), "be2": params["be2"].astype(_F32),
    }


_WEIGHT_KEYS = ("wqkv", "bqkv", "wo_t", "bo", "w1_t", "b1", "w2_t", "b2",
                "g1", "be1", "g2", "be2")


# -----------------------------------------------------------------------------
# Wrappers
# -----------------------------------------------------------------------------
def encoder_layer_batch_first(x, prep, *, nhead, eps=1e-5, need_weights=False,
                              approx_recip=True):
    """x: (B, S, D) fp32 -> (y (B, S, D), attn_weights (B, S, S) or None)."""
    B, S, D = x.shape
    F_dim = prep["w1_t"].shape[1]
    H = nhead

    weights = [prep[k] for k in _WEIGHT_KEYS]
    w_bytes = sum(int(w.size) * w.dtype.itemsize for w in weights)

    single_buf = _single_buffered_weights_supported()
    budget = _vmem_budget_bytes()

    # Batch tile: as large as the VMEM budget allows, but keep grid length >= 2 so
    # both TensorCores of a dual-core chip (v7x) get work ("parallel" grid axis).
    per_b = _per_batch_vmem_bytes(S, D, F_dim, H, need_weights)
    resident_w = w_bytes * (1 if single_buf else 2)
    avail = max(budget - resident_w - (4 << 20), per_b)
    bt_cap = max(1, min(avail // per_b, max(1, B // 2)))
    Bt = 1
    for cand in range(int(min(bt_cap, B)), 0, -1):
        if B % cand == 0:
            Bt = cand
            break

    def weight_spec(a):
        nd = a.ndim
        idx = lambda b, _n=nd: (0,) * _n       # constant block index -> fetched once, resident
        if single_buf:
            return pl.BlockSpec(a.shape, idx, pipeline_mode=pl.Buffered(1))
        return pl.BlockSpec(a.shape, idx)

    in_specs = [pl.BlockSpec((Bt, S, D), lambda b: (b, 0, 0))]     # batch-tiled activations
    in_specs += [weight_spec(w) for w in weights]

    out_shapes = [jax.ShapeDtypeStruct((B, S, D), _F32)]
    out_specs = [pl.BlockSpec((Bt, S, D), lambda b: (b, 0, 0))]
    if need_weights:
        # NOTE: the (Bt, S, S) store is only lane-dense when S % 128 == 0; pad S
        # upstream for large models if the weights output is really needed.
        out_shapes.append(jax.ShapeDtypeStruct((B, S, S), _F32))
        out_specs.append(pl.BlockSpec((Bt, S, S), lambda b: (b, 0, 0)))

    kernel = functools.partial(encoder_layer_kernel, nhead=H, eps=eps,
                               need_weights=need_weights, approx_recip=approx_recip)

    cost = pl.CostEstimate(
        flops=int(2 * B * S * (4 * D * D + 2 * D * F_dim + 2 * S * D)),
        transcendentals=int(B * H * S * S),
        bytes_accessed=int(2 * B * S * D * 4 + w_bytes
                           + (B * S * S * 4 if need_weights else 0)),
    )

    outs = pl.pallas_call(
        kernel,
        out_shape=tuple(out_shapes),
        grid_spec=pltpu.PrefetchScalarGridSpec(
            num_scalar_prefetch=0,
            grid=(B // Bt,),
            in_specs=in_specs,
            out_specs=out_specs,
        ),
        compiler_params=pltpu.CompilerParams(
            dimension_semantics=("parallel",),
            vmem_limit_bytes=int(budget),
        ),
        cost_estimate=cost,
    )(x, *weights)

    y = outs[0]
    w = outs[1] if need_weights else None
    return y, w


def my_transformer_encoder_layer(src, prep, *, nhead, eps=1e-5, need_weights=True,
                                 approx_recip=True):
    """PyTorch-parity API: src (S, B, D) -> (out (S, B, D), attn_weights (B, S, S)).

    The two transposes exist only for batch_first=False API parity; multi-layer
    models should keep activations (B, S, D) and call encoder_layer_batch_first
    (need_weights=False) directly to skip the HBM round-trips and the O(S^2)
    attention-weights writeback.
    """
    x = jnp.transpose(src, (1, 0, 2))                 # (B, S, D)
    y, w = encoder_layer_batch_first(x, prep, nhead=nhead, eps=eps,
                                     need_weights=need_weights,
                                     approx_recip=approx_recip)
    return jnp.transpose(y, (1, 0, 2)), w


# -----------------------------------------------------------------------------
# Pure-JAX reference + parameter init (validation only)
# -----------------------------------------------------------------------------
def ref_layer(src, params, *, nhead, eps=1e-5):
    x = jnp.transpose(src, (1, 0, 2))                 # (B, S, D)
    B, S, D = x.shape
    hd = D // nhead

    def ln(z, g, b):
        mu = z.mean(-1, keepdims=True)
        var = ((z - mu) ** 2).mean(-1, keepdims=True)
        return (z - mu) / jnp.sqrt(var + eps) * g + b

    q = x @ params["wq"].T + params["bq"][0]
    k = x @ params["wk"].T + params["bk"][0]
    v = x @ params["wv"].T + params["bv"][0]
    qh = q.reshape(B, S, nhead, hd).transpose(0, 2, 1, 3)
    kh = k.reshape(B, S, nhead, hd).transpose(0, 2, 1, 3)
    vh = v.reshape(B, S, nhead, hd).transpose(0, 2, 1, 3)
    scores = jnp.einsum("bhqd,bhkd->bhqk", qh, kh) / jnp.sqrt(hd)
    p = jax.nn.softmax(scores, axis=-1)
    attn = jnp.einsum("bhqk,bhkd->bhqd", p, vh).transpose(0, 2, 1, 3).reshape(B, S, D)
    attn = attn @ params["wo"].T + params["bo"][0]
    x1 = ln(x + attn, params["g1"][0], params["be1"][0])
    ff = jnp.maximum(x1 @ params["w1"].T + params["b1"][0], 0.0) @ params["w2"].T + params["b2"][0]
    y = ln(x1 + ff, params["g2"][0], params["be2"][0])
    return jnp.transpose(y, (1, 0, 2)), p.mean(axis=1)


def init_params(key, d_model, nhead, dim_feedforward):
    ks = jax.random.split(key, 12)
    n = lambda k, shape, s=0.1: (s * jax.random.normal(k, shape)).astype(jnp.float32)
    return {
        "wq": n(ks[0], (d_model, d_model)),
        "wk": n(ks[1], (d_model, d_model)),
        "wv": n(ks[2], (d_model, d_model)),
        "bq": n(ks[3], (1, d_model)),
        "bk": n(ks[4], (1, d_model)),
        "bv": n(ks[5], (1, d_model)),
        "wo": n(ks[6], (d_model, d_model)),
        "bo": n(ks[7], (1, d_model)),
        "w1": n(ks[8], (dim_feedforward, d_model)),
        "b1": n(ks[9], (1, dim_feedforward)),
        "w2": n(ks[10], (d_model, dim_feedforward)),
        "b2": n(ks[11], (1, d_model)),
        "g1": jnp.ones((1, d_model), jnp.float32),
        "be1": jnp.zeros((1, d_model), jnp.float32),
        "g2": jnp.ones((1, d_model), jnp.float32),
        "be2": jnp.zeros((1, d_model), jnp.float32),
    }


if __name__ == "__main__":
    S, B, D = 8, 2, 32          # seq, batch, d_model
    NHEAD = 4
    FF = 64                     # dim_feedforward (scaled down from 2048)

    key = jax.random.PRNGKey(0)
    k_src, k_params = jax.random.split(key)
    src = jax.random.normal(k_src, (S, B, D), dtype=jnp.float32)
    params = init_params(k_params, D, NHEAD, FF)

    # One-time weight preparation (head-grouped QKV, pre-transposed, bf16, scale folded).
    prep = jax.block_until_ready(prepare_params(params, nhead=NHEAD))

    # Module-parity call: (S, B, D) in/out, attention weights returned (like forward()).
    y, w = my_transformer_encoder_layer(src, prep, nhead=NHEAD, need_weights=True)
    y = jax.block_until_ready(y)
    w = jax.block_until_ready(w)

    # Fast path: batch-first, no attention-weights writeback, same prepared weights.
    y_fast, _ = encoder_layer_batch_first(jnp.transpose(src, (1, 0, 2)), prep,
                                          nhead=NHEAD, need_weights=False)
    y_fast = jax.block_until_ready(y_fast)

    y_ref, w_ref = ref_layer(src, params, nhead=NHEAD)
    assert y.shape == (S, B, D) and w.shape == (B, S, S)
    # bf16 matmuls + approx reciprocal -> looser tolerances than the fp32 reference.
    assert jnp.allclose(y, y_ref, atol=5e-2, rtol=5e-2), float(jnp.max(jnp.abs(y - y_ref)))
    assert jnp.allclose(w, w_ref, atol=1e-2, rtol=1e-2), float(jnp.max(jnp.abs(w - w_ref)))
    assert jnp.allclose(jnp.transpose(y_fast, (1, 0, 2)), y_ref, atol=5e-2, rtol=5e-2), \
        float(jnp.max(jnp.abs(jnp.transpose(y_fast, (1, 0, 2)) - y_ref)))

    print("KERNEL_OK")
</pallas_src>

<mosaic_0001>
module attributes {stable_mosaic.version = 11 : i64} {
  func.func @_probe_kernel(%arg0: i32, %arg1: memref<8x128xf32, #tpu.memory_space<vmem>>, %arg2: memref<8x128xf32, #tpu.memory_space<vmem>>) attributes {dimension_semantics = [#tpu.dimension_semantics<arbitrary>], iteration_bounds = array<i64: 1>, scalar_prefetch = 0 : i64, scratch_operands = 0 : i64, tpu.core_type = #tpu.core_type<tc>, window_params = [{pipeline_mode = #tpu.pipeline_mode<synchronous>, transform_indices = @transform_0, window_bounds = array<i64: 8, 128>}, {pipeline_mode = #tpu.pipeline_mode<synchronous>, transform_indices = @transform_1, window_bounds = array<i64: 8, 128>}]} {
    %c0 = arith.constant 0 : index
    %c0_0 = arith.constant 0 : index
    %0 = vector.load %arg1[%c0, %c0_0] : memref<8x128xf32, #tpu.memory_space<vmem>>, vector<8x128xf32>
    %c0_1 = arith.constant 0 : index
    %c0_2 = arith.constant 0 : index
    %1 = vector.load %arg2[%c0_1, %c0_2] : memref<8x128xf32, #tpu.memory_space<vmem>>, vector<8x128xf32>
    tpu.vector_store %arg2[%c0_1, %c0_2], %0 {strides = array<i32>} : memref<8x128xf32, #tpu.memory_space<vmem>>, vector<8x128xf32>,
    return
  }
  func.func @transform_0(%arg0: i32) -> (i32, i32) {
    %c0_i32 = arith.constant 0 : i32
    %c0_i32_0 = arith.constant 0 : i32
    %c0_i32_1 = arith.constant 0 : i32
    return %c0_i32, %c0_i32_0 : i32, i32
  }
  func.func @transform_1(%arg0: i32) -> (i32, i32) {
    %c0_i32 = arith.constant 0 : i32
    %c0_i32_0 = arith.constant 0 : i32
    %c0_i32_1 = arith.constant 0 : i32
    return %c0_i32, %c0_i32_0 : i32, i32
  }
}

module attributes {stable_mosaic.version = 11 : i64} {
  func.func @encoder_layer_kernel(%arg0: i32, %arg1: memref<1x8x32xf32, #tpu.memory_space<vmem>>, %arg2: memref<12x32x8xbf16, #tpu.memory_space<vmem>>, %arg3: memref<12x1x8xf32, #tpu.memory_space<vmem>>, %arg4: memref<32x32xbf16, #tpu.memory_space<vmem>>, %arg5: memref<1x32xf32, #tpu.memory_space<vmem>>, %arg6: memref<32x64xbf16, #tpu.memory_space<vmem>>, %arg7: memref<1x64xf32, #tpu.memory_space<vmem>>, %arg8: memref<64x32xbf16, #tpu.memory_space<vmem>>, %arg9: memref<1x32xf32, #tpu.memory_space<vmem>>, %arg10: memref<1x32xf32, #tpu.memory_space<vmem>>, %arg11: memref<1x32xf32, #tpu.memory_space<vmem>>, %arg12: memref<1x32xf32, #tpu.memory_space<vmem>>, %arg13: memref<1x32xf32, #tpu.memory_space<vmem>>, %arg14: memref<1x8x32xf32, #tpu.memory_space<vmem>>, %arg15: memref<1x8x8xf32, #tpu.memory_space<vmem>>) attributes {dimension_semantics = [#tpu.dimension_semantics<parallel>], iteration_bounds = array<i64: 2>, scalar_prefetch = 0 : i64, scratch_operands = 0 : i64, tpu.core_type = #tpu.core_type<tc>, window_params = [{transform_indices = @transform_0, window_bounds = array<i64: 1, 8, 32>}, {pipeline_mode = #tpu.pipeline_mode<synchronous>, transform_indices = @transform_1, window_bounds = array<i64: 12, 32, 8>}, {pipeline_mode = #tpu.pipeline_mode<synchronous>, transform_indices = @transform_2, window_bounds = array<i64: 12, 1, 8>}, {pipeline_mode = #tpu.pipeline_mode<synchronous>, transform_indices = @transform_3, window_bounds = array<i64: 32, 32>}, {pipeline_mode = #tpu.pipeline_mode<synchronous>, transform_indices = @transform_4, window_bounds = array<i64: 1, 32>}, {pipeline_mode = #tpu.pipeline_mode<synchronous>, transform_indices = @transform_5, window_bounds = array<i64: 32, 64>}, {pipeline_mode = #tpu.pipeline_mode<synchronous>, transform_indices = @transform_6, window_bounds = array<i64: 1, 64>}, {pipeline_mode = #tpu.pipeline_mode<synchronous>, transform_indices = @transform_7, window_bounds = array<i64: 64, 32>}, {pipeline_mode = #tpu.pipeline_mode<synchronous>, transform_indices = @transform_8, window_bounds = array<i64: 1, 32>}, {pipeline_mode = #tpu.pipeline_mode<synchronous>, transform_indices = @transform_9, window_bounds = array<i64: 1, 32>}, {pipeline_mode = #tpu.pipeline_mode<synchronous>, transform_indices = @transform_10, window_bounds = array<i64: 1, 32>}, {pipeline_mode = #tpu.pipeline_mode<synchronous>, transform_indices = @transform_11, window_bounds = array<i64: 1, 32>}, {pipeline_mode = #tpu.pipeline_mode<synchronous>, transform_indices = @transform_12, window_bounds = array<i64: 1, 32>}, {transform_indices = @transform_13, window_bounds = array<i64: 1, 8, 32>}, {transform_indices = @transform_14, window_bounds = array<i64: 1, 8, 8>}]} {
    %c0 = arith.constant 0 : index
    %c0_0 = arith.constant 0 : index
    %c0_1 = arith.constant 0 : index
    %0 = vector.load %arg1[%c0, %c0_0, %c0_1] : memref<1x8x32xf32, #tpu.memory_space<vmem>>, vector<1x8x32xf32>
    %1 = vector.shape_cast %0 : vector<1x8x32xf32> to vector<8x32xf32>
    %2 = arith.truncf %1 : vector<8x32xf32> to vector<8x32xbf16>
    %c0_2 = arith.constant 0 : index
    %c0_3 = arith.constant 0 : index
    %c0_4 = arith.constant 0 : index
    %3 = vector.load %arg2[%c0_2, %c0_3, %c0_4] : memref<12x32x8xbf16, #tpu.memory_space<vmem>>, vector<1x32x8xbf16>
    %4 = vector.shape_cast %3 : vector<1x32x8xbf16> to vector<32x8xbf16>
    %cst = arith.constant dense<0.000000e+00> : vector<8x8xf32>
    %5 = tpu.matmul %2, %4, %cst {dimension_numbers = #tpu.dot_dimension_numbers<[1], [0], [0], [1], [0, 0, 1, 1], [], []>} : vector<8x32xbf16>, vector<32x8xbf16>, vector<8x8xf32> -> vector<8x8xf32>
    %c0_5 = arith.constant 0 : index
    %c0_6 = arith.constant 0 : index
    %c0_7 = arith.constant 0 : index
    %6 = vector.load %arg3[%c0_5, %c0_6, %c0_7] : memref<12x1x8xf32, #tpu.memory_space<vmem>>, vector<1x1x8xf32>
    %7 = vector.shape_cast %6 : vector<1x1x8xf32> to vector<1x8xf32>
    %8 = vector.broadcast %7 : vector<1x8xf32> to vector<8x8xf32>
    %9 = arith.addf %5, %8 : vector<8x8xf32>
    %10 = arith.truncf %9 : vector<8x8xf32> to vector<8x8xbf16>
    %11 = vector.shape_cast %10 : vector<8x8xbf16> to vector<1x8x8xbf16>
    %c1 = arith.constant 1 : index
    %c0_8 = arith.constant 0 : index
    %c0_9 = arith.constant 0 : index
    %12 = vector.load %arg2[%c1, %c0_8, %c0_9] : memref<12x32x8xbf16, #tpu.memory_space<vmem>>, vector<1x32x8xbf16>
    %13 = vector.shape_cast %12 : vector<1x32x8xbf16> to vector<32x8xbf16>
    %cst_10 = arith.constant dense<0.000000e+00> : vector<8x8xf32>
    %14 = tpu.matmul %2, %13, %cst_10 {dimension_numbers = #tpu.dot_dimension_numbers<[1], [0], [0], [1], [0, 0, 1, 1], [], []>} : vector<8x32xbf16>, vector<32x8xbf16>, vector<8x8xf32> -> vector<8x8xf32>
    %c1_11 = arith.constant 1 : index
    %c0_12 = arith.constant 0 : index
    %c0_13 = arith.constant 0 : index
    %15 = vector.load %arg3[%c1_11, %c0_12, %c0_13] : memref<12x1x8xf32, #tpu.memory_space<vmem>>, vector<1x1x8xf32>
    %16 = vector.shape_cast %15 : vector<1x1x8xf32> to vector<1x8xf32>
    %17 = vector.broadcast %16 : vector<1x8xf32> to vector<8x8xf32>
    %18 = arith.addf %14, %17 : vector<8x8xf32>
    %19 = arith.truncf %18 : vector<8x8xf32> to vector<8x8xbf16>
    %20 = vector.shape_cast %19 : vector<8x8xbf16> to vector<1x8x8xbf16>
    %c2 = arith.constant 2 : index
    %c0_14 = arith.constant 0 : index
    %c0_15 = arith.constant 0 : index
    %21 = vector.load %arg2[%c2, %c0_14, %c0_15] : memref<12x32x8xbf16, #tpu.memory_space<vmem>>, vector<1x32x8xbf16>
    %22 = vector.shape_cast %21 : vector<1x32x8xbf16> to vector<32x8xbf16>
    %cst_16 = arith.constant dense<0.000000e+00> : vector<8x8xf32>
    %23 = tpu.matmul %2, %22, %cst_16 {dimension_numbers = #tpu.dot_dimension_numbers<[1], [0], [0], [1], [0, 0, 1, 1], [], []>} : vector<8x32xbf16>, vector<32x8xbf16>, vector<8x8xf32> -> vector<8x8xf32>
    %c2_17 = arith.constant 2 : index
    %c0_18 = arith.constant 0 : index
    %c0_19 = arith.constant 0 : index
    %24 = vector.load %arg3[%c2_17, %c0_18, %c0_19] : memref<12x1x8xf32, #tpu.memory_space<vmem>>, vector<1x1x8xf32>
    %25 = vector.shape_cast %24 : vector<1x1x8xf32> to vector<1x8xf32>
    %26 = vector.broadcast %25 : vector<1x8xf32> to vector<8x8xf32>
    %27 = arith.addf %23, %26 : vector<8x8xf32>
    %28 = arith.truncf %27 : vector<8x8xf32> to vector<8x8xbf16>
    %29 = vector.shape_cast %28 : vector<8x8xbf16> to vector<1x8x8xbf16>
    %c3 = arith.constant 3 : index
    %c0_20 = arith.constant 0 : index
    %c0_21 = arith.constant 0 : index
    %30 = vector.load %arg2[%c3, %c0_20, %c0_21] : memref<12x32x8xbf16, #tpu.memory_space<vmem>>, vector<1x32x8xbf16>
    %31 = vector.shape_cast %30 : vector<1x32x8xbf16> to vector<32x8xbf16>
    %cst_22 = arith.constant dense<0.000000e+00> : vector<8x8xf32>
    %32 = tpu.matmul %2, %31, %cst_22 {dimension_numbers = #tpu.dot_dimension_numbers<[1], [0], [0], [1], [0, 0, 1, 1], [], []>} : vector<8x32xbf16>, vector<32x8xbf16>, vector<8x8xf32> -> vector<8x8xf32>
    %c3_23 = arith.constant 3 : index
    %c0_24 = arith.constant 0 : index
    %c0_25 = arith.constant 0 : index
    %33 = vector.load %arg3[%c3_23, %c0_24, %c0_25] : memref<12x1x8xf32, #tpu.memory_space<vmem>>, vector<1x1x8xf32>
    %34 = vector.shape_cast %33 : vector<1x1x8xf32> to vector<1x8xf32>
    %35 = vector.broadcast %34 : vector<1x8xf32> to vector<8x8xf32>
    %36 = arith.addf %32, %35 : vector<8x8xf32>
    %37 = arith.truncf %36 : vector<8x8xf32> to vector<8x8xbf16>
    %38 = vector.shape_cast %37 : vector<8x8xbf16> to vector<1x8x8xbf16>
    %39 = tpu.concatenate %11, %20, %29, %38 in 0 : vector<1x8x8xbf16>, vector<1x8x8xbf16>, vector<1x8x8xbf16>, vector<1x8x8xbf16> -> vector<4x8x8xbf16>
    %c4 = arith.constant 4 : index
    %c0_26 = arith.constant 0 : index
    %c0_27 = arith.constant 0 : index
    %40 = vector.load %arg2[%c4, %c0_26, %c0_27] : memref<12x32x8xbf16, #tpu.memory_space<vmem>>, vector<1x32x8xbf16>
    %41 = vector.shape_cast %40 : vector<1x32x8xbf16> to vector<32x8xbf16>
    %cst_28 = arith.constant dense<0.000000e+00> : vector<8x8xf32>
    %42 = tpu.matmul %2, %41, %cst_28 {dimension_numbers = #tpu.dot_dimension_numbers<[1], [0], [0], [1], [0, 0, 1, 1], [], []>} : vector<8x32xbf16>, vector<32x8xbf16>, vector<8x8xf32> -> vector<8x8xf32>
    %c4_29 = arith.constant 4 : index
    %c0_30 = arith.constant 0 : index
    %c0_31 = arith.constant 0 : index
    %43 = vector.load %arg3[%c4_29, %c0_30, %c0_31] : memref<12x1x8xf32, #tpu.memory_space<vmem>>, vector<1x1x8xf32>
    %44 = vector.shape_cast %43 : vector<1x1x8xf32> to vector<1x8xf32>
    %45 = vector.broadcast %44 : vector<1x8xf32> to vector<8x8xf32>
    %46 = arith.addf %42, %45 : vector<8x8xf32>
    %47 = arith.truncf %46 : vector<8x8xf32> to vector<8x8xbf16>
    %48 = vector.shape_cast %47 : vector<8x8xbf16> to vector<1x8x8xbf16>
    %c5 = arith.constant 5 : index
    %c0_32 = arith.constant 0 : index
    %c0_33 = arith.constant 0 : index
    %49 = vector.load %arg2[%c5, %c0_32, %c0_33] : memref<12x32x8xbf16, #tpu.memory_space<vmem>>, vector<1x32x8xbf16>
    %50 = vector.shape_cast %49 : vector<1x32x8xbf16> to vector<32x8xbf16>
    %cst_34 = arith.constant dense<0.000000e+00> : vector<8x8xf32>
    %51 = tpu.matmul %2, %50, %cst_34 {dimension_numbers = #tpu.dot_dimension_numbers<[1], [0], [0], [1], [0, 0, 1, 1], [], []>} : vector<8x32xbf16>, vector<32x8xbf16>, vector<8x8xf32> -> vector<8x8xf32>
    %c5_35 = arith.constant 5 : index
    %c0_36 = arith.constant 0 : index
    %c0_37 = arith.constant 0 : index
    %52 = vector.load %arg3[%c5_35, %c0_36, %c0_37] : memref<12x1x8xf32, #tpu.memory_space<vmem>>, vector<1x1x8xf32>
    %53 = vector.shape_cast %52 : vector<1x1x8xf32> to vector<1x8xf32>
    %54 = vector.broadcast %53 : vector<1x8xf32> to vector<8x8xf32>
    %55 = arith.addf %51, %54 : vector<8x8xf32>
    %56 = arith.truncf %55 : vector<8x8xf32> to vector<8x8xbf16>
    %57 = vector.shape_cast %56 : vector<8x8xbf16> to vector<1x8x8xbf16>
    %c6 = arith.constant 6 : index
    %c0_38 = arith.constant 0 : index
    %c0_39 = arith.constant 0 : index
    %58 = vector.load %arg2[%c6, %c0_38, %c0_39] : memref<12x32x8xbf16, #tpu.memory_space<vmem>>, vector<1x32x8xbf16>
    %59 = vector.shape_cast %58 : vector<1x32x8xbf16> to vector<32x8xbf16>
    %cst_40 = arith.constant dense<0.000000e+00> : vector<8x8xf32>
    %60 = tpu.matmul %2, %59, %cst_40 {dimension_numbers = #tpu.dot_dimension_numbers<[1], [0], [0], [1], [0, 0, 1, 1], [], []>} : vector<8x32xbf16>, vector<32x8xbf16>, vector<8x8xf32> -> vector<8x8xf32>
    %c6_41 = arith.constant 6 : index
    %c0_42 = arith.constant 0 : index
    %c0_43 = arith.constant 0 : index
    %61 = vector.load %arg3[%c6_41, %c0_42, %c0_43] : memref<12x1x8xf32, #tpu.memory_space<vmem>>, vector<1x1x8xf32>
    %62 = vector.shape_cast %61 : vector<1x1x8xf32> to vector<1x8xf32>
    %63 = vector.broadcast %62 : vector<1x8xf32> to vector<8x8xf32>
    %64 = arith.addf %60, %63 : vector<8x8xf32>
    %65 = arith.truncf %64 : vector<8x8xf32> to vector<8x8xbf16>
    %66 = vector.shape_cast %65 : vector<8x8xbf16> to vector<1x8x8xbf16>
    %c7 = arith.constant 7 : index
    %c0_44 = arith.constant 0 : index
    %c0_45 = arith.constant 0 : index
    %67 = vector.load %arg2[%c7, %c0_44, %c0_45] : memref<12x32x8xbf16, #tpu.memory_space<vmem>>, vector<1x32x8xbf16>
    %68 = vector.shape_cast %67 : vector<1x32x8xbf16> to vector<32x8xbf16>
    %cst_46 = arith.constant dense<0.000000e+00> : vector<8x8xf32>
    %69 = tpu.matmul %2, %68, %cst_46 {dimension_numbers = #tpu.dot_dimension_numbers<[1], [0], [0], [1], [0, 0, 1, 1], [], []>} : vector<8x32xbf16>, vector<32x8xbf16>, vector<8x8xf32> -> vector<8x8xf32>
    %c7_47 = arith.constant 7 : index
    %c0_48 = arith.constant 0 : index
    %c0_49 = arith.constant 0 : index
    %70 = vector.load %arg3[%c7_47, %c0_48, %c0_49] : memref<12x1x8xf32, #tpu.memory_space<vmem>>, vector<1x1x8xf32>
    %71 = vector.shape_cast %70 : vector<1x1x8xf32> to vector<1x8xf32>
    %72 = vector.broadcast %71 : vector<1x8xf32> to vector<8x8xf32>
    %73 = arith.addf %69, %72 : vector<8x8xf32>
    %74 = arith.truncf %73 : vector<8x8xf32> to vector<8x8xbf16>
    %75 = vector.shape_cast %74 : vector<8x8xbf16> to vector<1x8x8xbf16>
    %76 = tpu.concatenate %48, %57, %66, %75 in 0 : vector<1x8x8xbf16>, vector<1x8x8xbf16>, vector<1x8x8xbf16>, vector<1x8x8xbf16> -> vector<4x8x8xbf16>
    %c8 = arith.constant 8 : index
    %c0_50 = arith.constant 0 : index
    %c0_51 = arith.constant 0 : index
    %77 = vector.load %arg2[%c8, %c0_50, %c0_51] : memref<12x32x8xbf16, #tpu.memory_space<vmem>>, vector<1x32x8xbf16>
    %78 = vector.shape_cast %77 : vector<1x32x8xbf16> to vector<32x8xbf16>
    %cst_52 = arith.constant dense<0.000000e+00> : vector<8x8xf32>
    %79 = tpu.matmul %2, %78, %cst_52 {dimension_numbers = #tpu.dot_dimension_numbers<[1], [0], [0], [1], [0, 0, 1, 1], [], []>} : vector<8x32xbf16>, vector<32x8xbf16>, vector<8x8xf32> -> vector<8x8xf32>
    %c8_53 = arith.constant 8 : index
    %c0_54 = arith.constant 0 : index
    %c0_55 = arith.constant 0 : index
    %80 = vector.load %arg3[%c8_53, %c0_54, %c0_55] : memref<12x1x8xf32, #tpu.memory_space<vmem>>, vector<1x1x8xf32>
    %81 = vector.shape_cast %80 : vector<1x1x8xf32> to vector<1x8xf32>
    %82 = vector.broadcast %81 : vector<1x8xf32> to vector<8x8xf32>
    %83 = arith.addf %79, %82 : vector<8x8xf32>
    %84 = arith.truncf %83 : vector<8x8xf32> to vector<8x8xbf16>
    %85 = vector.shape_cast %84 : vector<8x8xbf16> to vector<1x8x8xbf16>
    %c9 = arith.constant 9 : index
    %c0_56 = arith.constant 0 : index
    %c0_57 = arith.constant 0 : index
    %86 = vector.load %arg2[%c9, %c0_56, %c0_57] : memref<12x32x8xbf16, #tpu.memory_space<vmem>>, vector<1x32x8xbf16>
    %87 = vector.shape_cast %86 : vector<1x32x8xbf16> to vector<32x8xbf16>
    %cst_58 = arith.constant dense<0.000000e+00> : vector<8x8xf32>
    %88 = tpu.matmul %2, %87, %cst_58 {dimension_numbers = #tpu.dot_dimension_numbers<[1], [0], [0], [1], [0, 0, 1, 1], [], []>} : vector<8x32xbf16>, vector<32x8xbf16>, vector<8x8xf32> -> vector<8x8xf32>
    %c9_59 = arith.constant 9 : index
    %c0_60 = arith.constant 0 : index
    %c0_61 = arith.constant 0 : index
    %89 = vector.load %arg3[%c9_59, %c0_60, %c0_61] : memref<12x1x8xf32, #tpu.memory_space<vmem>>, vector<1x1x8xf32>
    %90 = vector.shape_cast %89 : vector<1x1x8xf32> to vector<1x8xf32>
    %91 = vector.broadcast %90 : vector<1x8xf32> to vector<8x8xf32>
    %92 = arith.addf %88, %91 : vector<8x8xf32>
    %93 = arith.truncf %92 : vector<8x8xf32> to vector<8x8xbf16>
    %94 = vector.shape_cast %93 : vector<8x8xbf16> to vector<1x8x8xbf16>
    %c10 = arith.constant 10 : index
    %c0_62 = arith.constant 0 : index
    %c0_63 = arith.constant 0 : index
    %95 = vector.load %arg2[%c10, %c0_62, %c0_63] : memref<12x32x8xbf16, #tpu.memory_space<vmem>>, vector<1x32x8xbf16>
    %96 = vector.shape_cast %95 : vector<1x32x8xbf16> to vector<32x8xbf16>
    %cst_64 = arith.constant dense<0.000000e+00> : vector<8x8xf32>
    %97 = tpu.matmul %2, %96, %cst_64 {dimension_numbers = #tpu.dot_dimension_numbers<[1], [0], [0], [1], [0, 0, 1, 1], [], []>} : vector<8x32xbf16>, vector<32x8xbf16>, vector<8x8xf32> -> vector<8x8xf32>
    %c10_65 = arith.constant 10 : index
    %c0_66 = arith.constant 0 : index
    %c0_67 = arith.constant 0 : index
    %98 = vector.load %arg3[%c10_65, %c0_66, %c0_67] : memref<12x1x8xf32, #tpu.memory_space<vmem>>, vector<1x1x8xf32>
    %99 = vector.shape_cast %98 : vector<1x1x8xf32> to vector<1x8xf32>
    %100 = vector.broadcast %99 : vector<1x8xf32> to vector<8x8xf32>
    %101 = arith.addf %97, %100 : vector<8x8xf32>
    %102 = arith.truncf %101 : vector<8x8xf32> to vector<8x8xbf16>
    %103 = vector.shape_cast %102 : vector<8x8xbf16> to vector<1x8x8xbf16>
    %c11 = arith.constant 11 : index
    %c0_68 = arith.constant 0 : index
    %c0_69 = arith.constant 0 : index
    %104 = vector.load %arg2[%c11, %c0_68, %c0_69] : memref<12x32x8xbf16, #tpu.memory_space<vmem>>, vector<1x32x8xbf16>
    %105 = vector.shape_cast %104 : vector<1x32x8xbf16> to vector<32x8xbf16>
    %cst_70 = arith.constant dense<0.000000e+00> : vector<8x8xf32>
    %106 = tpu.matmul %2, %105, %cst_70 {dimension_numbers = #tpu.dot_dimension_numbers<[1], [0], [0], [1], [0, 0, 1, 1], [], []>} : vector<8x32xbf16>, vector<32x8xbf16>, vector<8x8xf32> -> vector<8x8xf32>
    %c11_71 = arith.constant 11 : index
    %c0_72 = arith.constant 0 : index
    %c0_73 = arith.constant 0 : index
    %107 = vector.load %arg3[%c11_71, %c0_72, %c0_73] : memref<12x1x8xf32, #tpu.memory_space<vmem>>, vector<1x1x8xf32>
    %108 = vector.shape_cast %107 : vector<1x1x8xf32> to vector<1x8xf32>
    %109 = vector.broadcast %108 : vector<1x8xf32> to vector<8x8xf32>
    %110 = arith.addf %106, %109 : vector<8x8xf32>
    %111 = arith.truncf %110 : vector<8x8xf32> to vector<8x8xbf16>
    %112 = vector.shape_cast %111 : vector<8x8xbf16> to vector<1x8x8xbf16>
    %113 = tpu.concatenate %85, %94, %103, %112 in 0 : vector<1x8x8xbf16>, vector<1x8x8xbf16>, vector<1x8x8xbf16>, vector<1x8x8xbf16> -> vector<4x8x8xbf16>
    "tpu.trace_start"() <{level = 10 : i32, message = "gqd,gkd->gqk"}> : () -> ()
    %cst_74 = arith.constant dense<0.000000e+00> : vector<4x8x8xf32>
    %114 = tpu.matmul %39, %76, %cst_74 {dimension_numbers = #tpu.dot_dimension_numbers<[2], [2], [1], [1], [0, 0, 0, 1, 1, 1], [0], [0]>} : vector<4x8x8xbf16>, vector<4x8x8xbf16>, vector<4x8x8xf32> -> vector<4x8x8xf32>
    "tpu.trace_stop"() : () -> ()
    %cst_75 = arith.constant dense<0xFF800000> : vector<4x8xf32>
    %115 = vector.multi_reduction <maximumf>, %114, %cst_75 [2] : vector<4x8x8xf32> to vector<4x8xf32>
    %116 = vector.shape_cast %115 : vector<4x8xf32> to vector<4x8x1xf32>
    %117 = vector.broadcast %116 : vector<4x8x1xf32> to vector<4x8x8xf32>
    %118 = arith.subf %114, %117 : vector<4x8x8xf32>
    %119 = math.exp %118 : vector<4x8x8xf32>
    %cst_76 = arith.constant dense<0.000000e+00> : vector<4x8xf32>
    %120 = vector.multi_reduction <add>, %119, %cst_76 [2] : vector<4x8x8xf32> to vector<4x8xf32>
    %121 = vector.shape_cast %120 : vector<4x8xf32> to vector<4x8x1xf32>
    %122 = tpu.reciprocal %121 {approx = true} : vector<4x8x1xf32> -> vector<4x8x1xf32>
    %123 = vector.broadcast %122 : vector<4x8x1xf32> to vector<4x8x8xf32>
    %124 = arith.mulf %119, %123 : vector<4x8x8xf32>
    %125 = vector.shape_cast %124 : vector<4x8x8xf32> to vector<4x1x8x8xf32>
    %cst_77 = arith.constant dense<0.000000e+00> : vector<1x8x8xf32>
    %126 = vector.multi_reduction <add>, %125, %cst_77 [0] : vector<4x1x8x8xf32> to vector<1x8x8xf32>
    %cst_78 = arith.constant 4.000000e+00 : f32
    %127 = vector.broadcast %cst_78 : f32 to vector<1x8x8xf32>
    %128 = arith.divf %126, %127 : vector<1x8x8xf32>
    %c0_79 = arith.constant 0 : index
    %c0_80 = arith.constant 0 : index
    %c0_81 = arith.constant 0 : index
    %129 = vector.load %arg15[%c0_79, %c0_80, %c0_81] : memref<1x8x8xf32, #tpu.memory_space<vmem>>, vector<1x8x8xf32>
    tpu.vector_store %arg15[%c0_79, %c0_80, %c0_81], %128 {strides = array<i32>} : memref<1x8x8xf32, #tpu.memory_space<vmem>>, vector<1x8x8xf32>,
    %130 = arith.truncf %124 : vector<4x8x8xf32> to vector<4x8x8xbf16>
    "tpu.trace_start"() <{level = 10 : i32, message = "gqk,gkd->gqd"}> : () -> ()
    %cst_82 = arith.constant dense<0.000000e+00> : vector<4x8x8xf32>
    %131 = tpu.matmul %130, %113, %cst_82 {dimension_numbers = #tpu.dot_dimension_numbers<[2], [1], [1], [2], [0, 0, 0, 1, 1, 2], [0], [0]>} : vector<4x8x8xbf16>, vector<4x8x8xbf16>, vector<4x8x8xf32> -> vector<4x8x8xf32>
    "tpu.trace_stop"() : () -> ()
    %132 = vector.extract_strided_slice %131 {offsets = [0, 0, 0], sizes = [1, 8, 8], strides = [1, 1, 1]} : vector<4x8x8xf32> to vector<1x8x8xf32>
    %133 = vector.shape_cast %132 : vector<1x8x8xf32> to vector<8x8xf32>
    %134 = arith.truncf %133 : vector<8x8xf32> to vector<8x8xbf16>
    %135 = vector.extract_strided_slice %131 {offsets = [1, 0, 0], sizes = [1, 8, 8], strides = [1, 1, 1]} : vector<4x8x8xf32> to vector<1x8x8xf32>
    %136 = vector.shape_cast %135 : vector<1x8x8xf32> to vector<8x8xf32>
    %137 = arith.truncf %136 : vector<8x8xf32> to vector<8x8xbf16>
    %138 = vector.extract_strided_slice %131 {offsets = [2, 0, 0], sizes = [1, 8, 8], strides = [1, 1, 1]} : vector<4x8x8xf32> to vector<1x8x8xf32>
    %139 = vector.shape_cast %138 : vector<1x8x8xf32> to vector<8x8xf32>
    %140 = arith.truncf %139 : vector<8x8xf32> to vector<8x8xbf16>
    %141 = vector.extract_strided_slice %131 {offsets = [3, 0, 0], sizes = [1, 8, 8], strides = [1, 1, 1]} : vector<4x8x8xf32> to vector<1x8x8xf32>
    %142 = vector.shape_cast %141 : vector<1x8x8xf32> to vector<8x8xf32>
    %143 = arith.truncf %142 : vector<8x8xf32> to vector<8x8xbf16>
    %144 = tpu.concatenate %134, %137, %140, %143 in 1 : vector<8x8xbf16>, vector<8x8xbf16>, vector<8x8xbf16>, vector<8x8xbf16> -> vector<8x32xbf16>
    %c0_83 = arith.constant 0 : index
    %c0_84 = arith.constant 0 : index
    %145 = vector.load %arg4[%c0_83, %c0_84] : memref<32x32xbf16, #tpu.memory_space<vmem>>, vector<32x32xbf16>
    %cst_85 = arith.constant dense<0.000000e+00> : vector<8x32xf32>
    %146 = tpu.matmul %144, %145, %cst_85 {dimension_numbers = #tpu.dot_dimension_numbers<[1], [0], [0], [1], [0, 0, 1, 1], [], []>} : vector<8x32xbf16>, vector<32x32xbf16>, vector<8x32xf32> -> vector<8x32xf32>
    %c0_86 = arith.constant 0 : index
    %c0_87 = arith.constant 0 : index
    %147 = vector.load %arg5[%c0_86, %c0_87] : memref<1x32xf32, #tpu.memory_space<vmem>>, vector<1x32xf32>
    %148 = vector.broadcast %147 : vector<1x32xf32> to vector<8x32xf32>
    %149 = arith.addf %146, %148 : vector<8x32xf32>
    %150 = arith.addf %1, %149 : vector<8x32xf32>
    %c0_88 = arith.constant 0 : index
    %c0_89 = arith.constant 0 : index
    %151 = vector.load %arg10[%c0_88, %c0_89] : memref<1x32xf32, #tpu.memory_space<vmem>>, vector<1x32xf32>
    %c0_90 = arith.constant 0 : index
    %c0_91 = arith.constant 0 : index
    %152 = vector.load %arg11[%c0_90, %c0_91] : memref<1x32xf32, #tpu.memory_space<vmem>>, vector<1x32xf32>
    %cst_92 = arith.constant dense<0.000000e+00> : vector<8xf32>
    %153 = vector.multi_reduction <add>, %150, %cst_92 [1] : vector<8x32xf32> to vector<8xf32>
    %154 = vector.shape_cast %153 : vector<8xf32> to vector<8x1xf32>
    %cst_93 = arith.constant 3.200000e+01 : f32
    %155 = vector.broadcast %cst_93 : f32 to vector<8x1xf32>
    %156 = arith.divf %154, %155 : vector<8x1xf32>
    %157 = vector.broadcast %156 : vector<8x1xf32> to vector<8x32xf32>
    %158 = arith.subf %150, %157 : vector<8x32xf32>
    %159 = arith.mulf %158, %158 : vector<8x32xf32>
    %cst_94 = arith.constant dense<0.000000e+00> : vector<8xf32>
    %160 = vector.multi_reduction <add>, %159, %cst_94 [1] : vector<8x32xf32> to vector<8xf32>
    %161 = vector.shape_cast %160 : vector<8xf32> to vector<8x1xf32>
    %cst_95 = arith.constant 3.200000e+01 : f32
    %162 = vector.broadcast %cst_95 : f32 to vector<8x1xf32>
    %163 = arith.divf %161, %162 : vector<8x1xf32>
    %164 = vector.broadcast %156 : vector<8x1xf32> to vector<8x32xf32>
    %165 = arith.subf %150, %164 : vector<8x32xf32>
    %cst_96 = arith.constant 9.99999974E-6 : f32
    %166 = vector.broadcast %cst_96 : f32 to vector<8x1xf32>
    %167 = arith.addf %163, %166 : vector<8x1xf32>
    %168 = math.rsqrt %167 : vector<8x1xf32>
    %169 = vector.broadcast %168 : vector<8x1xf32> to vector<8x32xf32>
    %170 = arith.mulf %165, %169 : vector<8x32xf32>
    %171 = vector.broadcast %151 : vector<1x32xf32> to vector<8x32xf32>
    %172 = arith.mulf %170, %171 : vector<8x32xf32>
    %173 = vector.broadcast %152 : vector<1x32xf32> to vector<8x32xf32>
    %174 = arith.addf %172, %173 : vector<8x32xf32>
    %175 = arith.truncf %174 : vector<8x32xf32> to vector<8x32xbf16>
    %c0_97 = arith.constant 0 : index
    %c0_98 = arith.constant 0 : index
    %176 = vector.load %arg6[%c0_97, %c0_98] : memref<32x64xbf16, #tpu.memory_space<vmem>>, vector<32x64xbf16>
    %cst_99 = arith.constant dense<0.000000e+00> : vector<8x64xf32>
    %177 = tpu.matmul %175, %176, %cst_99 {dimension_numbers = #tpu.dot_dimension_numbers<[1], [0], [0], [1], [0, 0, 1, 1], [], []>} : vector<8x32xbf16>, vector<32x64xbf16>, vector<8x64xf32> -> vector<8x64xf32>
    %c0_100 = arith.constant 0 : index
    %c0_101 = arith.constant 0 : index
    %178 = vector.load %arg7[%c0_100, %c0_101] : memref<1x64xf32, #tpu.memory_space<vmem>>, vector<1x64xf32>
    %179 = vector.broadcast %178 : vector<1x64xf32> to vector<8x64xf32>
    %180 = arith.addf %177, %179 : vector<8x64xf32>
    %cst_102 = arith.constant 0.000000e+00 : f32
    %181 = vector.broadcast %cst_102 : f32 to vector<8x64xf32>
    %182 = arith.maximumf %180, %181 : vector<8x64xf32>
    %183 = arith.truncf %182 : vector<8x64xf32> to vector<8x64xbf16>
    %c0_103 = arith.constant 0 : index
    %c0_104 = arith.constant 0 : index
    %184 = vector.load %arg8[%c0_103, %c0_104] : memref<64x32xbf16, #tpu.memory_space<vmem>>, vector<64x32xbf16>
    %cst_105 = arith.constant dense<0.000000e+00> : vector<8x32xf32>
    %185 = tpu.matmul %183, %184, %cst_105 {dimension_numbers = #tpu.dot_dimension_numbers<[1], [0], [0], [1], [0, 0, 1, 1], [], []>} : vector<8x64xbf16>, vector<64x32xbf16>, vector<8x32xf32> -> vector<8x32xf32>
    %c0_106 = arith.constant 0 : index
    %c0_107 = arith.constant 0 : index
    %186 = vector.load %arg9[%c0_106, %c0_107] : memref<1x32xf32, #tpu.memory_space<vmem>>, vector<1x32xf32>
    %187 = vector.broadcast %186 : vector<1x32xf32> to vector<8x32xf32>
    %188 = arith.addf %185, %187 : vector<8x32xf32>
    %189 = arith.addf %174, %188 : vector<8x32xf32>
    %c0_108 = arith.constant 0 : index
    %c0_109 = arith.constant 0 : index
    %190 = vector.load %arg12[%c0_108, %c0_109] : memref<1x32xf32, #tpu.memory_space<vmem>>, vector<1x32xf32>
    %c0_110 = arith.constant 0 : index
    %c0_111 = arith.constant 0 : index
    %191 = vector.load %arg13[%c0_110, %c0_111] : memref<1x32xf32, #tpu.memory_space<vmem>>, vector<1x32xf32>
    %cst_112 = arith.constant dense<0.000000e+00> : vector<8xf32>
    %192 = vector.multi_reduction <add>, %189, %cst_112 [1] : vector<8x32xf32> to vector<8xf32>
    %193 = vector.shape_cast %192 : vector<8xf32> to vector<8x1xf32>
    %cst_113 = arith.constant 3.200000e+01 : f32
    %194 = vector.broadcast %cst_113 : f32 to vector<8x1xf32>
    %195 = arith.divf %193, %194 : vector<8x1xf32>
    %196 = vector.broadcast %195 : vector<8x1xf32> to vector<8x32xf32>
    %197 = arith.subf %189, %196 : vector<8x32xf32>
    %198 = arith.mulf %197, %197 : vector<8x32xf32>
    %cst_114 = arith.constant dense<0.000000e+00> : vector<8xf32>
    %199 = vector.multi_reduction <add>, %198, %cst_114 [1] : vector<8x32xf32> to vector<8xf32>
    %200 = vector.shape_cast %199 : vector<8xf32> to vector<8x1xf32>
    %cst_115 = arith.constant 3.200000e+01 : f32
    %201 = vector.broadcast %cst_115 : f32 to vector<8x1xf32>
    %202 = arith.divf %200, %201 : vector<8x1xf32>
    %203 = vector.broadcast %195 : vector<8x1xf32> to vector<8x32xf32>
    %204 = arith.subf %189, %203 : vector<8x32xf32>
    %cst_116 = arith.constant 9.99999974E-6 : f32
    %205 = vector.broadcast %cst_116 : f32 to vector<8x1xf32>
    %206 = arith.addf %202, %205 : vector<8x1xf32>
    %207 = math.rsqrt %206 : vector<8x1xf32>
    %208 = vector.broadcast %207 : vector<8x1xf32> to vector<8x32xf32>
    %209 = arith.mulf %204, %208 : vector<8x32xf32>
    %210 = vector.broadcast %190 : vector<1x32xf32> to vector<8x32xf32>
    %211 = arith.mulf %209, %210 : vector<8x32xf32>
    %212 = vector.broadcast %191 : vector<1x32xf32> to vector<8x32xf32>
    %213 = arith.addf %211, %212 : vector<8x32xf32>
    %214 = vector.shape_cast %213 : vector<8x32xf32> to vector<1x8x32xf32>
    %c0_117 = arith.constant 0 : index
    %c0_118 = arith.constant 0 : index
    %c0_119 = arith.constant 0 : index
    %215 = vector.load %arg14[%c0_117, %c0_118, %c0_119] : memref<1x8x32xf32, #tpu.memory_space<vmem>>, vector<1x8x32xf32>
    tpu.vector_store %arg14[%c0_117, %c0_118, %c0_119], %214 {strides = array<i32>} : memref<1x8x32xf32, #tpu.memory_space<vmem>>, vector<1x8x32xf32>,
    return
  }
  func.func @transform_0(%arg0: i32) -> (i32, i32, i32) {
    %c0_i32 = arith.constant 0 : i32
    %c0_i32_0 = arith.constant 0 : i32
    %c0_i32_1 = arith.constant 0 : i32
    return %arg0, %c0_i32, %c0_i32_0 : i32, i32, i32
  }
  func.func @transform_1(%arg0: i32) -> (i32, i32, i32) {
    %c0_i32 = arith.constant 0 : i32
    %c0_i32_0 = arith.constant 0 : i32
    %c0_i32_1 = arith.constant 0 : i32
    %c0_i32_2 = arith.constant 0 : i32
    return %c0_i32, %c0_i32_0, %c0_i32_1 : i32, i32, i32
  }
  func.func @transform_2(%arg0: i32) -> (i32, i32, i32) {
    %c0_i32 = arith.constant 0 : i32
    %c0_i32_0 = arith.constant 0 : i32
    %c0_i32_1 = arith.constant 0 : i32
    %c0_i32_2 = arith.constant 0 : i32
    return %c0_i32, %c0_i32_0, %c0_i32_1 : i32, i32, i32
  }
  func.func @transform_3(%arg0: i32) -> (i32, i32) {
    %c0_i32 = arith.constant 0 : i32
    %c0_i32_0 = arith.constant 0 : i32
    %c0_i32_1 = arith.constant 0 : i32
    return %c0_i32, %c0_i32_0 : i32, i32
  }
  func.func @transform_4(%arg0: i32) -> (i32, i32) {
    %c0_i32 = arith.constant 0 : i32
    %c0_i32_0 = arith.constant 0 : i32
    %c0_i32_1 = arith.constant 0 : i32
    return %c0_i32, %c0_i32_0 : i32, i32
  }
  func.func @transform_5(%arg0: i32) -> (i32, i32) {
    %c0_i32 = arith.constant 0 : i32
    %c0_i32_0 = arith.constant 0 : i32
    %c0_i32_1 = arith.constant 0 : i32
    return %c0_i32, %c0_i32_0 : i32, i32
  }
  func.func @transform_6(%arg0: i32) -> (i32, i32) {
    %c0_i32 = arith.constant 0 : i32
    %c0_i32_0 = arith.constant 0 : i32
    %c0_i32_1 = arith.constant 0 : i32
    return %c0_i32, %c0_i32_0 : i32, i32
  }
  func.func @transform_7(%arg0: i32) -> (i32, i32) {
    %c0_i32 = arith.constant 0 : i32
    %c0_i32_0 = arith.constant 0 : i32
    %c0_i32_1 = arith.constant 0 : i32
    return %c0_i32, %c0_i32_0 : i32, i32
  }
  func.func @transform_8(%arg0: i32) -> (i32, i32) {
    %c0_i32 = arith.constant 0 : i32
    %c0_i32_0 = arith.constant 0 : i32
    %c0_i32_1 = arith.constant 0 : i32
    return %c0_i32, %c0_i32_0 : i32, i32
  }
  func.func @transform_9(%arg0: i32) -> (i32, i32) {
    %c0_i32 = arith.constant 0 : i32
    %c0_i32_0 = arith.constant 0 : i32
    %c0_i32_1 = arith.constant 0 : i32
    return %c0_i32, %c0_i32_0 : i32, i32
  }
  func.func @transform_10(%arg0: i32) -> (i32, i32) {
    %c0_i32 = arith.constant 0 : i32
    %c0_i32_0 = arith.constant 0 : i32
    %c0_i32_1 = arith.constant 0 : i32
    return %c0_i32, %c0_i32_0 : i32, i32
  }
  func.func @transform_11(%arg0: i32) -> (i32, i32) {
    %c0_i32 = arith.constant 0 : i32
    %c0_i32_0 = arith.constant 0 : i32
    %c0_i32_1 = arith.constant 0 : i32
    return %c0_i32, %c0_i32_0 : i32, i32
  }
  func.func @transform_12(%arg0: i32) -> (i32, i32) {
    %c0_i32 = arith.constant 0 : i32
    %c0_i32_0 = arith.constant 0 : i32
    %c0_i32_1 = arith.constant 0 : i32
    return %c0_i32, %c0_i32_0 : i32, i32
  }
  func.func @transform_13(%arg0: i32) -> (i32, i32, i32) {
    %c0_i32 = arith.constant 0 : i32
    %c0_i32_0 = arith.constant 0 : i32
    %c0_i32_1 = arith.constant 0 : i32
    return %arg0, %c0_i32, %c0_i32_0 : i32, i32, i32
  }
  func.func @transform_14(%arg0: i32) -> (i32, i32, i32) {
    %c0_i32 = arith.constant 0 : i32
    %c0_i32_0 = arith.constant 0 : i32
    %c0_i32_1 = arith.constant 0 : i32
    return %arg0, %c0_i32, %c0_i32_0 : i32, i32, i32
  }
}

</mosaic_0001>

<llo_original>
// kernel: tpu_custom_call.1
$region0: #{tpu_custom_call.1}
  #allocation0 [shape = 'u32[]', space=smem, size = 0x4, offset = 0x4, fixed_abs, tag = 'smem constant byte address 0x4 - core index']
  #allocation1 [shape = 'u32[144,128]{1,0:T(1,128)}', space=vmem, size = 0x12000, scoped, tag = 'internal scratch']
  %s0 = inlined_call_operand.hbm [shape: f32[8,128], index: 0, kind: input, shape index: {}]
  %s1 = inlined_call_operand.hbm [shape: f32[8,128], index: 1, kind: output, shape index: {}]
  %s2 = sld [smem:[#allocation0]]
  $region18: #{tpu_custom_call.1} parent=0
    _
  %s4 = ssub.s32 1, %s2
  %s5 = scalar_select 0, %s4, %s2
  $region1: #{tpu_custom_call.1} parent=0
    #allocation2 [shape = 'u8[4096]{0}', space=vmem, size = 0x1000, scoped, tag = 'input window, operand 0, single buffered']
    #allocation3 [shape = 's32[1]{0}', space=sflag, size = 0x4, scoped, tag = 'scoped memory for tpu_custom_call.1']
    #allocation4 [shape = 's32[1]{0}', space=sflag, size = 0x4, scoped, tag = 'scoped memory for tpu_custom_call.1']
    #allocation5 [shape = 'u8[4096]{0}', space=vmem, size = 0x1000, scoped, tag = 'output window, operand 0, single buffered']
    %6 = vsyncpa [#allocation3], 0
    %7 = vsyncpa [#allocation4], 0
    // Predicated region
    $region2: #{tpu_custom_call.1} parent=1 // pred_check
      _
    $region3: #{tpu_custom_call.1} parent=1 // pred_check_branch
      %9 = sbr.rel (0) target = $region5
    $region4: #{tpu_custom_call.1} parent=1 // pred_region
      %s11 = ssub.s32 128, 128
      %12 = vsyncadd [#allocation3], %s11
      %s14 = sshll.u32 [#allocation2], 4
      %s15 = int_to_ptr.vmem [resolvable:$true] %s14
      %17 = dma.hbm_to_vmem [thread:$0]  %s0, 128, %s15, [#allocation3]
    $region5: #{tpu_custom_call.1} parent=1 // pred_fallthru
      _
    // Predicated region
    $region6: #{tpu_custom_call.1} parent=1 // pred_check
      _
    $region7: #{tpu_custom_call.1} parent=1 // pred_check_branch
      %19 = sbr.rel (0) target = $region9
    $region8: #{tpu_custom_call.1} parent=1 // pred_region
      %20 = dma.done [#allocation3], 128
    $region9: #{tpu_custom_call.1} parent=1 // pred_fallthru
      _
    %v21 = vld [vmem:[#allocation2] sm:$0xff]
    %22 = vst [vmem:[#allocation5] sm:$0xff] %v21
    // Predicated region
    $region10: #{tpu_custom_call.1} parent=1 // pred_check
      _
    $region11: #{tpu_custom_call.1} parent=1 // pred_check_branch
      %24 = sbr.rel (0) target = $region13
    $region12: #{tpu_custom_call.1} parent=1 // pred_region
      %s26 = ssub.s32 128, 128
      %27 = vsyncadd [#allocation4], %s26
      %s29 = sshll.u32 [#allocation5], 4
      %s30 = int_to_ptr.vmem [resolvable:$true] %s29
      %32 = dma.vmem_to_hbm [thread:$0]  %s30, 128, %s1, [#allocation4]
    $region13: #{tpu_custom_call.1} parent=1 // pred_fallthru
      _
    // Predicated region
    $region14: #{tpu_custom_call.1} parent=1 // pred_check
      _
    $region15: #{tpu_custom_call.1} parent=1 // pred_check_branch
      %34 = sbr.rel (0) target = $region17
    $region16: #{tpu_custom_call.1} parent=1 // pred_region
      %35 = dma.done [#allocation4], 128
    $region17: #{tpu_custom_call.1} parent=1 // pred_fallthru
      _
    %36 = vsyncpa [#allocation3], 1
    %37 = vsyncpa [#allocation4], 1

// kernel: tpu_custom_call.1
$region0: #{tpu_custom_call.1}
  #allocation0 [shape = 'u32[]', space=smem, size = 0x4, offset = 0x4, fixed_abs, tag = 'smem constant byte address 0x4 - core index']
  #allocation1 [shape = 'u32[144,128]{1,0:T(1,128)}', space=vmem, size = 0x12000, scoped, tag = 'internal scratch']
  %s0 = inlined_call_operand.vmem [shape: f32[2,8,32], index: 0, kind: input, shape index: {}]
  %s1 = inlined_call_operand.vmem [shape: bf16[12,32,8], index: 1, kind: input, shape index: {}]
  %s2 = inlined_call_operand.vmem [shape: f32[12,1,8], index: 2, kind: input, shape index: {}]
  %s3 = inlined_call_operand.vmem [shape: bf16[32,32], index: 3, kind: input, shape index: {}]
  %s4 = inlined_call_operand.vmem [shape: f32[1,32], index: 4, kind: input, shape index: {}]
  %s5 = inlined_call_operand.vmem [shape: bf16[32,64], index: 5, kind: input, shape index: {}]
  %s6 = inlined_call_operand.vmem [shape: f32[1,64], index: 6, kind: input, shape index: {}]
  %s7 = inlined_call_operand.vmem [shape: bf16[64,32], index: 7, kind: input, shape index: {}]
  %s8 = inlined_call_operand.vmem [shape: f32[1,32], index: 8, kind: input, shape index: {}]
  %s9 = inlined_call_operand.vmem [shape: f32[1,32], index: 9, kind: input, shape index: {}]
  %s10 = inlined_call_operand.vmem [shape: f32[1,32], index: 10, kind: input, shape index: {}]
  %s11 = inlined_call_operand.vmem [shape: f32[1,32], index: 11, kind: input, shape index: {}]
  %s12 = inlined_call_operand.vmem [shape: f32[1,32], index: 12, kind: input, shape index: {}]
  %s13 = inlined_call_operand.hbm [shape: f32[2,8,32], index: 13, kind: output, shape index: {0}]
  %s14 = inlined_call_operand.hbm [shape: f32[2,8,8], index: 14, kind: output, shape index: {1}]
  %15 = xla_tuple %s13, %s14
  %s16 = sld [smem:[#allocation0]]
  $region93: #{tpu_custom_call.1} parent=0
    _
  %s18 = ssub.s32 1, %s16
  %s19 = scalar_select 0, %s18, %s16
  $region1: #{tpu_custom_call.1} parent=0
    #allocation2 [shape = 'u8[8192]{0}', space=vmem, size = 0x2000, scoped, tag = 'output window, operand 0']
    #allocation3 [shape = 's32[2]{0}', space=sflag, size = 0x8, scoped, tag = 'scoped memory for tpu_custom_call.1']
    #allocation4 [shape = 'u8[8192]{0}', space=vmem, size = 0x2000, scoped, tag = 'output window, operand 1']
    #allocation5 [shape = 's32[2]{0}', space=sflag, size = 0x8, scoped, tag = 'scoped memory for tpu_custom_call.1']
    %20 = vsyncpa [#allocation3], 0
    %s21 = scalar_lea.sflag [#allocation3], 1
    %22 = vsyncpa %s21, 0
    %23 = vsyncpa [#allocation5], 0
    %s24 = scalar_lea.sflag [#allocation5], 1
    %25 = vsyncpa %s24, 0
    loop: start=0, step=1, limit=4
    $region2: #{tpu_custom_call.1} parent=1 // loop_pre_header
      _
    $region3: #{tpu_custom_call.1} parent=1 // loop_header
      %s27 = sphi 0, %s31
      %p28 = scmp.ge.s32.totalorder %s27, 4
      %s37 = sphi 0, %s39
      %s40 = sphi 0, %s37
      %s41 = sphi 0, %s40
      %s57 = sphi 0, %s41
      %s61 = sphi 0, %s61
      %s63 = sphi 0, %s61
      %s64 = sphi 0, %s63
      %s78 = sphi 0, %s64
      %s82 = sphi 0, %s82
      %s84 = sphi 0, %s82
      %s85 = sphi 0, %s84
      %s99 = sphi 0, %s85
      %s103 = sphi 0, %s103
      %s105 = sphi 0, %s103
      %s106 = sphi 0, %s105
      %s120 = sphi 0, %s106
      %s124 = sphi 0, %s124
      %s126 = sphi 0, %s124
      %s127 = sphi 0, %s126
      %s141 = sphi 0, %s127
      %s145 = sphi 0, %s145
      %s147 = sphi 0, %s145
      %s148 = sphi 0, %s147
      %s162 = sphi 0, %s148
      %s166 = sphi 0, %s166
      %s168 = sphi 0, %s166
      %s169 = sphi 0, %s168
      %s183 = sphi 0, %s169
      %s187 = sphi 0, %s187
      %s189 = sphi 0, %s187
      %s190 = sphi 0, %s189
      %s204 = sphi 0, %s190
      %s208 = sphi 0, %s208
      %s210 = sphi 0, %s208
      %s211 = sphi 0, %s210
      %s225 = sphi 0, %s211
      %s229 = sphi 0, %s229
      %s231 = sphi 0, %s229
      %s232 = sphi 0, %s231
      %s246 = sphi 0, %s232
      %s250 = sphi 0, %s250
      %s252 = sphi 0, %s250
      %s253 = sphi 0, %s252
      %s267 = sphi 0, %s253
      %s271 = sphi 0, %s271
      %s273 = sphi 0, %s271
      %s274 = sphi 0, %s273
      %s288 = sphi 0, %s274
      %s292 = sphi 0, %s292
      %s294 = sphi 0, %s292
      %s295 = sphi 0, %s294
      %s309 = sphi 0, %s295
      %s315 = sphi 0, %s317
      %s318 = sphi 0, %s315
      %s319 = sphi 0, %s318
      %s335 = sphi 0, %s319
      %s341 = sphi 0, %s343
      %s344 = sphi 0, %s341
      %s345 = sphi 0, %s344
      %s361 = sphi 0, %s345
    $region4: #{tpu_custom_call.1} parent=1 // loop_header_branch
      %30 = sbr.rel (%p28) target = $region8
    $region5: #{tpu_custom_call.1} parent=1 // loop_body
      %s32 = ssub.s32 %s27, 1
      %s33 = ssub.s32 %s27, 2
      %s34 = sadd.s32 %s27, 1
      %s35 = ssub.s32 %s27, %s34
      %p36 = scmp.eq.s32.totalorder %s35, 0
      %s38 = sadd.s32 %s37, 1
      %s39 = scalar_select %p36, %s37, %s38
      %p42 = pneg %p36
      %p43 = scmp.eq.s32.totalorder %s27, 1
      %p44 = por %p42, %p43
      %p45 = scmp.ne.s32.totalorder %s37, %s40
      %p46 = scmp.eq.s32.totalorder %s27, 0
      %p47 = por %p45, %p46
      %p48 = scmp.ne.s32.totalorder %s37, %s40
      %p49 = scmp.eq.s32.totalorder %s32, 1
      %p50 = por %p48, %p49
      %p51 = scmp.ne.s32.totalorder %s40, %s41
      %p52 = scmp.eq.s32.totalorder %s32, 0
      %p53 = por %p51, %p52
      %p54 = scmp.ne.s32.totalorder %s40, %s41
      %p55 = scmp.eq.s32.totalorder %s33, 1
      %p56 = por %p54, %p55
      %p58 = scmp.ne.s32.totalorder %s41, %s57
      %p59 = scmp.eq.s32.totalorder %s33, 0
      %p60 = por %p58, %p59
      %s62 = sadd.s32 %s61, 1
      %p65 = scmp.eq.s32.totalorder %s27, 1
      %p66 = scmp.ne.s32.totalorder %s61, %s63
      %p67 = scmp.eq.s32.totalorder %s27, 0
      %p68 = por %p66, %p67
      %p69 = scmp.ne.s32.totalorder %s61, %s63
      %p70 = scmp.eq.s32.totalorder %s32, 1
      %p71 = por %p69, %p70
      %p72 = scmp.ne.s32.totalorder %s63, %s64
      %p73 = scmp.eq.s32.totalorder %s32, 0
      %p74 = por %p72, %p73
      %p75 = scmp.ne.s32.totalorder %s63, %s64
      %p76 = scmp.eq.s32.totalorder %s33, 1
      %p77 = por %p75, %p76
      %p79 = scmp.ne.s32.totalorder %s64, %s78
      %p80 = scmp.eq.s32.totalorder %s33, 0
      %p81 = por %p79, %p80
      %s83 = sadd.s32 %s82, 1
      %p86 = scmp.eq.s32.totalorder %s27, 1
      %p87 = scmp.ne.s32.totalorder %s82, %s84
      %p88 = scmp.eq.s32.totalorder %s27, 0
      %p89 = por %p87, %p88
      %p90 = scmp.ne.s32.totalorder %s82, %s84
      %p91 = scmp.eq.s32.totalorder %s32, 1
      %p92 = por %p90, %p91
      %p93 = scmp.ne.s32.totalorder %s84, %s85
      %p94 = scmp.eq.s32.totalorder %s32, 0
      %p95 = por %p93, %p94
      %p96 = scmp.ne.s32.totalorder %s84, %s85
      %p97 = scmp.eq.s32.totalorder %s33, 1
      %p98 = por %p96, %p97
      %p100 = scmp.ne.s32.totalorder %s85, %s99
      %p101 = scmp.eq.s32.totalorder %s33, 0
      %p102 = por %p100, %p101
      %s104 = sadd.s32 %s103, 1
      %p107 = scmp.eq.s32.totalorder %s27, 1
      %p108 = scmp.ne.s32.totalorder %s103, %s105
      %p109 = scmp.eq.s32.totalorder %s27, 0
      %p110 = por %p108, %p109
      %p111 = scmp.ne.s32.totalorder %s103, %s105
      %p112 = scmp.eq.s32.totalorder %s32, 1
      %p113 = por %p111, %p112
      %p114 = scmp.ne.s32.totalorder %s105, %s106
      %p115 = scmp.eq.s32.totalorder %s32, 0
      %p116 = por %p114, %p115
      %p117 = scmp.ne.s32.totalorder %s105, %s106
      %p118 = scmp.eq.s32.totalorder %s33, 1
      %p119 = por %p117, %p118
      %p121 = scmp.ne.s32.totalorder %s106, %s120
      %p122 = scmp.eq.s32.totalorder %s33, 0
      %p123 = por %p121, %p122
      %s125 = sadd.s32 %s124, 1
      %p128 = scmp.eq.s32.totalorder %s27, 1
      %p129 = scmp.ne.s32.totalorder %s124, %s126
      %p130 = scmp.eq.s32.totalorder %s27, 0
      %p131 = por %p129, %p130
      %p132 = scmp.ne.s32.totalorder %s124, %s126
      %p133 = scmp.eq.s32.totalorder %s32, 1
      %p134 = por %p132, %p133
      %p135 = scmp.ne.s32.totalorder %s126, %s127
      %p136 = scmp.eq.s32.totalorder %s32, 0
      %p137 = por %p135, %p136
      %p138 = scmp.ne.s32.totalorder %s126, %s127
      %p139 = scmp.eq.s32.totalorder %s33, 1
      %p140 = por %p138, %p139
      %p142 = scmp.ne.s32.totalorder %s127, %s141
      %p143 = scmp.eq.s32.totalorder %s33, 0
      %p144 = por %p142, %p143
      %s146 = sadd.s32 %s145, 1
      %p149 = scmp.eq.s32.totalorder %s27, 1
      %p150 = scmp.ne.s32.totalorder %s145, %s147
      %p151 = scmp.eq.s32.totalorder %s27, 0
      %p152 = por %p150, %p151
      %p153 = scmp.ne.s32.totalorder %s145, %s147
      %p154 = scmp.eq.s32.totalorder %s32, 1
      %p155 = por %p153, %p154
      %p156 = scmp.ne.s32.totalorder %s147, %s148
      %p157 = scmp.eq.s32.totalorder %s32, 0
      %p158 = por %p156, %p157
      %p159 = scmp.ne.s32.totalorder %s147, %s148
      %p160 = scmp.eq.s32.totalorder %s33, 1
      %p161 = por %p159, %p160
      %p163 = scmp.ne.s32.totalorder %s148, %s162
      %p164 = scmp.eq.s32.totalorder %s33, 0
      %p165 = por %p163, %p164
      %s167 = sadd.s32 %s166, 1
      %p170 = scmp.eq.s32.totalorder %s27, 1
      %p171 = scmp.ne.s32.totalorder %s166, %s168
      %p172 = scmp.eq.s32.totalorder %s27, 0
      %p173 = por %p171, %p172
      %p174 = scmp.ne.s32.totalorder %s166, %s168
      %p175 = scmp.eq.s32.totalorder %s32, 1
      %p176 = por %p174, %p175
      %p177 = scmp.ne.s32.totalorder %s168, %s169
      %p178 = scmp.eq.s32.totalorder %s32, 0
      %p179 = por %p177, %p178
      %p180 = scmp.ne.s32.totalorder %s168, %s169
      %p181 = scmp.eq.s32.totalorder %s33, 1
      %p182 = por %p180, %p181
      %p184 = scmp.ne.s32.totalorder %s169, %s183
      %p185 = scmp.eq.s32.totalorder %s33, 0
      %p186 = por %p184, %p185
      %s188 = sadd.s32 %s187, 1
      %p191 = scmp.eq.s32.totalorder %s27, 1
      %p192 = scmp.ne.s32.totalorder %s187, %s189
      %p193 = scmp.eq.s32.totalorder %s27, 0
      %p194 = por %p192, %p193
      %p195 = scmp.ne.s32.totalorder %s187, %s189
      %p196 = scmp.eq.s32.totalorder %s32, 1
      %p197 = por %p195, %p196
      %p198 = scmp.ne.s32.totalorder %s189, %s190
      %p199 = scmp.eq.s32.totalorder %s32, 0
      %p200 = por %p198, %p199
      %p201 = scmp.ne.s32.totalorder %s189, %s190
      %p202 = scmp.eq.s32.totalorder %s33, 1
      %p203 = por %p201, %p202
      %p205 = scmp.ne.s32.totalorder %s190, %s204
      %p206 = scmp.eq.s32.totalorder %s33, 0
      %p207 = por %p205, %p206
      %s209 = sadd.s32 %s208, 1
      %p212 = scmp.eq.s32.totalorder %s27, 1
      %p213 = scmp.ne.s32.totalorder %s208, %s210
      %p214 = scmp.eq.s32.totalorder %s27, 0
      %p215 = por %p213, %p214
      %p216 = scmp.ne.s32.totalorder %s208, %s210
      %p217 = scmp.eq.s32.totalorder %s32, 1
      %p218 = por %p216, %p217
      %p219 = scmp.ne.s32.totalorder %s210, %s211
      %p220 = scmp.eq.s32.totalorder %s32, 0
      %p221 = por %p219, %p220
      %p222 = scmp.ne.s32.totalorder %s210, %s211
      %p223 = scmp.eq.s32.totalorder %s33, 1
      %p224 = por %p222, %p223
      %p226 = scmp.ne.s32.totalorder %s211, %s225
      %p227 = scmp.eq.s32.totalorder %s33, 0
      %p228 = por %p226, %p227
      %s230 = sadd.s32 %s229, 1
      %p233 = scmp.eq.s32.totalorder %s27, 1
      %p234 = scmp.ne.s32.totalorder %s229, %s231
      %p235 = scmp.eq.s32.totalorder %s27, 0
      %p236 = por %p234, %p235
      %p237 = scmp.ne.s32.totalorder %s229, %s231
      %p238 = scmp.eq.s32.totalorder %s32, 1
      %p239 = por %p237, %p238
      %p240 = scmp.ne.s32.totalorder %s231, %s232
      %p241 = scmp.eq.s32.totalorder %s32, 0
      %p242 = por %p240, %p241
      %p243 = scmp.ne.s32.totalorder %s231, %s232
      %p244 = scmp.eq.s32.totalorder %s33, 1
      %p245 = por %p243, %p244
      %p247 = scmp.ne.s32.totalorder %s232, %s246
      %p248 = scmp.eq.s32.totalorder %s33, 0
      %p249 = por %p247, %p248
      %s251 = sadd.s32 %s250, 1
      %p254 = scmp.eq.s32.totalorder %s27, 1
      %p255 = scmp.ne.s32.totalorder %s250, %s252
      %p256 = scmp.eq.s32.totalorder %s27, 0
      %p257 = por %p255, %p256
      %p258 = scmp.ne.s32.totalorder %s250, %s252
      %p259 = scmp.eq.s32.totalorder %s32, 1
      %p260 = por %p258, %p259
      %p261 = scmp.ne.s32.totalorder %s252, %s253
      %p262 = scmp.eq.s32.totalorder %s32, 0
      %p263 = por %p261, %p262
      %p264 = scmp.ne.s32.totalorder %s252, %s253
      %p265 = scmp.eq.s32.totalorder %s33, 1
      %p266 = por %p264, %p265
      %p268 = scmp.ne.s32.totalorder %s253, %s267
      %p269 = scmp.eq.s32.totalorder %s33, 0
      %p270 = por %p268, %p269
      %s272 = sadd.s32 %s271, 1
      %p275 = scmp.eq.s32.totalorder %s27, 1
      %p276 = scmp.ne.s32.totalorder %s271, %s273
      %p277 = scmp.eq.s32.totalorder %s27, 0
      %p278 = por %p276, %p277
      %p279 = scmp.ne.s32.totalorder %s271, %s273
      %p280 = scmp.eq.s32.totalorder %s32, 1
      %p281 = por %p279, %p280
      %p282 = scmp.ne.s32.totalorder %s273, %s274
      %p283 = scmp.eq.s32.totalorder %s32, 0
      %p284 = por %p282, %p283
      %p285 = scmp.ne.s32.totalorder %s273, %s274
      %p286 = scmp.eq.s32.totalorder %s33, 1
      %p287 = por %p285, %p286
      %p289 = scmp.ne.s32.totalorder %s274, %s288
      %p290 = scmp.eq.s32.totalorder %s33, 0
      %p291 = por %p289, %p290
      %s293 = sadd.s32 %s292, 1
      %p296 = scmp.eq.s32.totalorder %s27, 1
      %p297 = scmp.ne.s32.totalorder %s292, %s294
      %p298 = scmp.eq.s32.totalorder %s27, 0
      %p299 = por %p297, %p298
      %p300 = scmp.ne.s32.totalorder %s292, %s294
      %p301 = scmp.eq.s32.totalorder %s32, 1
      %p302 = por %p300, %p301
      %p303 = scmp.ne.s32.totalorder %s294, %s295
      %p304 = scmp.eq.s32.totalorder %s32, 0
      %p305 = por %p303, %p304
      %p306 = scmp.ne.s32.totalorder %s294, %s295
      %p307 = scmp.eq.s32.totalorder %s33, 1
      %p308 = por %p306, %p307
      %p310 = scmp.ne.s32.totalorder %s295, %s309
      %p311 = scmp.eq.s32.totalorder %s33, 0
      %p312 = por %p310, %p311
      %s313 = ssub.s32 %s27, %s34
      %p314 = scmp.eq.s32.totalorder %s313, 0
      %s316 = sadd.s32 %s315, 1
      %s317 = scalar_select %p314, %s315, %s316
      %p320 = pneg %p314
      %p321 = scmp.eq.s32.totalorder %s27, 1
      %p322 = por %p320, %p321
      %p323 = scmp.ne.s32.totalorder %s315, %s318
      %p324 = scmp.eq.s32.totalorder %s27, 0
      %p325 = por %p323, %p324
      %p326 = scmp.ne.s32.totalorder %s315, %s318
      %p327 = scmp.eq.s32.totalorder %s32, 1
      %p328 = por %p326, %p327
      %p329 = scmp.ne.s32.totalorder %s318, %s319
      %p330 = scmp.eq.s32.totalorder %s32, 0
      %p331 = por %p329, %p330
      %p332 = scmp.ne.s32.totalorder %s318, %s319
      %p333 = scmp.eq.s32.totalorder %s33, 1
      %p334 = por %p332, %p333
      %p336 = scmp.ne.s32.totalorder %s319, %s335
      %p337 = scmp.eq.s32.totalorder %s33, 0
      %p338 = por %p336, %p337
      %s339 = ssub.s32 %s27, %s34
      %p340 = scmp.eq.s32.totalorder %s339, 0
      %s342 = sadd.s32 %s341, 1
      %s343 = scalar_select %p340, %s341, %s342
      %p346 = pneg %p340
      %p347 = scmp.eq.s32.totalorder %s27, 1
      %p348 = por %p346, %p347
      %p349 = scmp.ne.s32.totalorder %s341, %s344
      %p350 = scmp.eq.s32.totalorder %s27, 0
      %p351 = por %p349, %p350
      %p352 = scmp.ne.s32.totalorder %s341, %s344
      %p353 = scmp.eq.s32.totalorder %s32, 1
      %p354 = por %p352, %p353
      %p355 = scmp.ne.s32.totalorder %s344, %s345
      %p356 = scmp.eq.s32.totalorder %s32, 0
      %p357 = por %p355, %p356
      %p358 = scmp.ne.s32.totalorder %s344, %s345
      %p359 = scmp.eq.s32.totalorder %s33, 1
      %p360 = por %p358, %p359
      %p362 = scmp.ne.s32.totalorder %s345, %s361
      %p363 = scmp.eq.s32.totalorder %s33, 0
      %p364 = por %p362, %p363
      %p365 = scmp.le.s32.totalorder 1, %s27
      %p366 = scmp.lt.s32.totalorder %s27, 3
      %p367 = pnand %p365, %p366
      %p368 = pneg %p367
      // Predicated region
      $region9: #{tpu_custom_call.1} parent=5 // pred_check
        _
      $region10: #{tpu_custom_call.1} parent=5 // pred_check_branch
        %370 = sbr.rel (%p367) target = $region12
      $region11: #{tpu_custom_call.1} parent=5 // pred_region
        %s371 = ssub.s32 %s27, 1
        // Predicated region
        $region13: #{tpu_custom_call.1} parent=11 // pred_check
          %p372 = pneg %p74
        $region14: #{tpu_custom_call.1} parent=11 // pred_check_branch
          %374 = sbr.rel (%p372) target = $region16
        $region15: #{tpu_custom_call.1} parent=11 // pred_region
          _
        $region16: #{tpu_custom_call.1} parent=11 // pred_fallthru
          _
        // Predicated region
        $region17: #{tpu_custom_call.1} parent=11 // pred_check
          %p375 = pneg %p95
        $region18: #{tpu_custom_call.1} parent=11 // pred_check_branch
          %377 = sbr.rel (%p375) target = $region20
        $region19: #{tpu_custom_call.1} parent=11 // pred_region
          _
        $region20: #{tpu_custom_call.1} parent=11 // pred_fallthru
          _
        // Predicated region
        $region21: #{tpu_custom_call.1} parent=11 // pred_check
          %p378 = pneg %p116
        $region22: #{tpu_custom_call.1} parent=11 // pred_check_branch
          %380 = sbr.rel (%p378) target = $region24
        $region23: #{tpu_custom_call.1} parent=11 // pred_region
          _
        $region24: #{tpu_custom_call.1} parent=11 // pred_fallthru
          _
        // Predicated region
        $region25: #{tpu_custom_call.1} parent=11 // pred_check
          %p381 = pneg %p137
        $region26: #{tpu_custom_call.1} parent=11 // pred_check_branch
          %383 = sbr.rel (%p381) target = $region28
        $region27: #{tpu_custom_call.1} parent=11 // pred_region
          _
        $region28: #{tpu_custom_call.1} parent=11 // pred_fallthru
          _
        // Predicated region
        $region29: #{tpu_custom_call.1} parent=11 // pred_check
          %p384 = pneg %p158
        $region30: #{tpu_custom_call.1} parent=11 // pred_check_branch
          %386 = sbr.rel (%p384) target = $region32
        $region31: #{tpu_custom_call.1} parent=11 // pred_region
          _
        $region32: #{tpu_custom_call.1} parent=11 // pred_fallthru
          _
        // Predicated region
        $region33: #{tpu_custom_call.1} parent=11 // pred_check
          %p387 = pneg %p179
        $region34: #{tpu_custom_call.1} parent=11 // pred_check_branch
          %389 = sbr.rel (%p387) target = $region36
        $region35: #{tpu_custom_call.1} parent=11 // pred_region
          _
        $region36: #{tpu_custom_call.1} parent=11 // pred_fallthru
          _
        // Predicated region
        $region37: #{tpu_custom_call.1} parent=11 // pred_check
          %p390 = pneg %p200
        $region38: #{tpu_custom_call.1} parent=11 // pred_check_branch
          %392 = sbr.rel (%p390) target = $region40
        $region39: #{tpu_custom_call.1} parent=11 // pred_region
          _
        $region40: #{tpu_custom_call.1} parent=11 // pred_fallthru
          _
        // Predicated region
        $region41: #{tpu_custom_call.1} parent=11 // pred_check
          %p393 = pneg %p221
        $region42: #{tpu_custom_call.1} parent=11 // pred_check_branch
          %395 = sbr.rel (%p393) target = $region44
        $region43: #{tpu_custom_call.1} parent=11 // pred_region
          _
        $region44: #{tpu_custom_call.1} parent=11 // pred_fallthru
          _
        // Predicated region
        $region45: #{tpu_custom_call.1} parent=11 // pred_check
          %p396 = pneg %p242
        $region46: #{tpu_custom_call.1} parent=11 // pred_check_branch
          %398 = sbr.rel (%p396) target = $region48
        $region47: #{tpu_custom_call.1} parent=11 // pred_region
          _
        $region48: #{tpu_custom_call.1} parent=11 // pred_fallthru
          _
        // Predicated region
        $region49: #{tpu_custom_call.1} parent=11 // pred_check
          %p399 = pneg %p263
        $region50: #{tpu_custom_call.1} parent=11 // pred_check_branch
          %401 = sbr.rel (%p399) target = $region52
        $region51: #{tpu_custom_call.1} parent=11 // pred_region
          _
        $region52: #{tpu_custom_call.1} parent=11 // pred_fallthru
          _
        // Predicated region
        $region53: #{tpu_custom_call.1} parent=11 // pred_check
          %p402 = pneg %p284
        $region54: #{tpu_custom_call.1} parent=11 // pred_check_branch
          %404 = sbr.rel (%p402) target = $region56
        $region55: #{tpu_custom_call.1} parent=11 // pred_region
          _
        $region56: #{tpu_custom_call.1} parent=11 // pred_fallthru
          _
        // Predicated region
        $region57: #{tpu_custom_call.1} parent=11 // pred_check
          %p405 = pneg %p305
        $region58: #{tpu_custom_call.1} parent=11 // pred_check_branch
          %407 = sbr.rel (%p405) target = $region60
        $region59: #{tpu_custom_call.1} parent=11 // pred_region
          _
        $region60: #{tpu_custom_call.1} parent=11 // pred_fallthru
          _
      $region12: #{tpu_custom_call.1} parent=5 // pred_fallthru
        _
      %p408 = scmp.lt.s32.totalorder %s27, 2
      // Predicated region
      $region61: #{tpu_custom_call.1} parent=5 // pred_check
        %p409 = pneg %p408
      $region62: #{tpu_custom_call.1} parent=5 // pred_check_branch
        %411 = sbr.rel (%p409) target = $region64
      $region63: #{tpu_custom_call.1} parent=5 // pred_region
        // Predicated region
        $region65: #{tpu_custom_call.1} parent=63 // pred_check
          %p412 = pneg %p47
        $region66: #{tpu_custom_call.1} parent=63 // pred_check_branch
          %414 = sbr.rel (%p412) target = $region68
        $region67: #{tpu_custom_call.1} parent=63 // pred_region
          %p415 = scmp.lt.s32.totalorder %s27, 1
          %s416 = scalar_select %p415, %s27, 1
          %s417 = smul.addr %s416, 8
          %s418 = scalar_lea.vmem %s0, %s417
        $region68: #{tpu_custom_call.1} parent=63 // pred_fallthru
          _
      $region64: #{tpu_custom_call.1} parent=5 // pred_fallthru
        _
      %p419 = scmp.le.s32.totalorder 1, %s27
      %p420 = scmp.lt.s32.totalorder %s27, 3
      %p421 = pnand %p419, %p420
      %p422 = pneg %p421
      // Predicated region
      $region69: #{tpu_custom_call.1} parent=5 // pred_check
        _
      $region70: #{tpu_custom_call.1} parent=5 // pred_check_branch
        %424 = sbr.rel (%p421) target = $region72
      $region71: #{tpu_custom_call.1} parent=5 // pred_region
        %s425 = ssub.s32 %s27, 1
        %p426 = scmp.lt.s32.totalorder %s32, 1
        %s427 = scalar_select %p426, %s32, 1
        %s428 = smul.addr %s427, 8
        %s429 = scalar_lea.vmem %s0, %s428
        %p430 = pneg %p53
        %p431 = pneg %p50
        %p432 = pneg %p74
        %p433 = pneg %p71
        %p434 = pneg %p95
        %p435 = pneg %p92
        %p436 = pneg %p116
        %p437 = pneg %p113
        %p438 = pneg %p137
        %p439 = pneg %p134
        %p440 = pneg %p158
        %p441 = pneg %p155
        %p442 = pneg %p179
        %p443 = pneg %p176
        %p444 = pneg %p200
        %p445 = pneg %p197
        %p446 = pneg %p221
        %p447 = pneg %p218
        %p448 = pneg %p242
        %p449 = pneg %p239
        %p450 = pneg %p263
        %p451 = pneg %p260
        %p452 = pneg %p284
        %p453 = pneg %p281
        %p454 = pneg %p305
        %p455 = pneg %p302
        %p456 = pneg %p331
        %p457 = pneg %p328
        %s458 = sand.u32 %s318, 1
        %s459 = scalar_lea.sflag [#allocation3], %s458
        %s460 = sand.u32 %s318, 1
        %s461 = smul.addr %s460, 8
        %s462 = scalar_lea.vmem [#allocation2], %s461
        %p463 = pneg %p357
        %p464 = pneg %p354
        %s465 = sand.u32 %s344, 1
        %s466 = scalar_lea.sflag [#allocation5], %s465
        %s467 = sand.u32 %s344, 1
        %s468 = smul.addr %s467, 8
        %s469 = scalar_lea.vmem [#allocation4], %s468
        %p470 = scmp.lt.s32.totalorder %s32, 1
        %s471 = scalar_select %p470, %s32, 1
        %s472 = smul.addr %s471, 8
        %s473 = scalar_lea.vmem %s0, %s472
        %v475 = vld [vmem:[%s473] sm:$0xff]
        %v476 = vpack.c.bf16 %v475, %v475
        %v477 = vld [vmem:[%s1] sm:$0xf]
        %v478 = vld [vmem:[%s1 + $0x4] sm:$0xf]
        %v479 = vld [vmem:[%s1 + $0x8] sm:$0xf]
        %v480 = vld [vmem:[%s1 + $0xc] sm:$0xf]
        %v481 = vld [vmem:[%s2] sm:$0x1]
        %v483 = vlaneseq
        %v484 = vshrl.u32 %v483, 7
        %v485 = vsub.s32 0, %v484
        %v486 = vrot.slane %v481, %v485
        %v492 = vunpack.c.l.b16 %v477
        %v493 = vunpack.c.l.b16 %v478
        %v494 = vunpack.c.l.b16 %v479
        %v495 = vunpack.c.l.b16 %v480
        %v496 = vpack.c.b16 %v493, %v492
        %v497 = vpack.c.b16 %v495, %v494
        %vm500 = vcmask 261120
        %v502 = vsel %vm500, %v476, 0
        %504 = vmatprep.subr.bf16.mxu0 0
        %505 = vmatpush1.bf16.msra.mxu0 %v496
        %506 = vmatprep.subr.bf16.mxu0 0
        %507 = vmatpush1.bf16.msra.mxu0 %v497
        %508 = vmatprep.subr.bf16.mxu0 0
        %509 = vmatpush1.bf16.msra.mxu0 0
        %510 = vmatprep.subr.bf16.mxu0 0
        %511 = vmatpush1.bf16.msra.mxu0 0
        %512 = vmatprep.subr.bf16.mxu0 0
        %513 = vmatpush1.bf16.msra.mxu0 0
        %514 = vmatprep.subr.bf16.mxu0 0
        %515 = vmatpush1.bf16.msra.mxu0 0
        %516 = vmatprep.subr.bf16.mxu0 0
        %517 = vmatpush1.bf16.msra.mxu0 0
        %518 = vmatprep.subr.bf16.mxu0 0
        %519 = vmatpush1.bf16.msra.mxu0 0
        %520 = vmatprep.subr.bf16.mxu0 0
        %521 = vmatpush1.bf16.msra.mxu0 0
        %522 = vmatprep.subr.bf16.mxu0 0
        %523 = vmatpush1.bf16.msra.mxu0 0
        %524 = vmatprep.subr.bf16.mxu0 0
        %525 = vmatpush1.bf16.msra.mxu0 0
        %526 = vmatprep.subr.bf16.mxu0 0
        %527 = vmatpush1.bf16.msra.mxu0 0
        %528 = vmatprep.subr.bf16.mxu0 0
        %529 = vmatpush1.bf16.msra.mxu0 0
        %530 = vmatprep.subr.bf16.mxu0 0
        %531 = vmatpush1.bf16.msra.mxu0 0
        %532 = vmatprep.subr.bf16.mxu0 0
        %533 = vmatpush1.bf16.msra.mxu0 0
        %534 = vmatprep.subr.bf16.mxu0 0
        %535 = vmatpush1.bf16.msra.mxu0 0
        %536 = vmatprep.mubr.bf16.mxu0 0
        %537 = vmatmul.mubr.bf16.gmra.mrb[0].mxu0 %v502
        %v538 = vpop.f32.mrb[0].mxu0
        %v539 = vadd.f32 %v486, %v538
        %v540 = vpop.f32.mrb[0].mxu0
        %v541 = vpop.f32.mrb[0].mxu0
        %v542 = vpop.f32.mrb[0].mxu0
        %543 = vdwg.mxu0
        %v544 = vpack.c.bf16 %v539, %v539
        %s545 = scalar_lea.vmem %s1, 16
        %v546 = vld [vmem:[%s545] sm:$0xf]
        %v547 = vld [vmem:[%s545 + $0x4] sm:$0xf]
        %v548 = vld [vmem:[%s545 + $0x8] sm:$0xf]
        %v549 = vld [vmem:[%s545 + $0xc] sm:$0xf]
        %s550 = scalar_lea.vmem %s2, 1
        %v551 = vld [vmem:[%s550] sm:$0x1]
        %v553 = vlaneseq
        %v554 = vshrl.u32 %v553, 7
        %v555 = vsub.s32 0, %v554
        %v556 = vrot.slane %v551, %v555
        %v562 = vunpack.c.l.b16 %v546
        %v563 = vunpack.c.l.b16 %v547
        %v564 = vunpack.c.l.b16 %v548
        %v565 = vunpack.c.l.b16 %v549
        %v566 = vpack.c.b16 %v563, %v562
        %v567 = vpack.c.b16 %v565, %v564
        %570 = vmatprep.subr.bf16.mxu0 0
        %571 = vmatpush1.bf16.msra.mxu0 %v566
        %572 = vmatprep.subr.bf16.mxu0 0
        %573 = vmatpush1.bf16.msra.mxu0 %v567
        %574 = vmatprep.subr.bf16.mxu0 0
        %575 = vmatpush1.bf16.msra.mxu0 0
        %576 = vmatprep.subr.bf16.mxu0 0
        %577 = vmatpush1.bf16.msra.mxu0 0
        %578 = vmatprep.subr.bf16.mxu0 0
        %579 = vmatpush1.bf16.msra.mxu0 0
        %580 = vmatprep.subr.bf16.mxu0 0
        %581 = vmatpush1.bf16.msra.mxu0 0
        %582 = vmatprep.subr.bf16.mxu0 0
        %583 = vmatpush1.bf16.msra.mxu0 0
        %584 = vmatprep.subr.bf16.mxu0 0
        %585 = vmatpush1.bf16.msra.mxu0 0
        %586 = vmatprep.subr.bf16.mxu0 0
        %587 = vmatpush1.bf16.msra.mxu0 0
        %588 = vmatprep.subr.bf16.mxu0 0
        %589 = vmatpush1.bf16.msra.mxu0 0
        %590 = vmatprep.subr.bf16.mxu0 0
        %591 = vmatpush1.bf16.msra.mxu0 0
        %592 = vmatprep.subr.bf16.mxu0 0
        %593 = vmatpush1.bf16.msra.mxu0 0
        %594 = vmatprep.subr.bf16.mxu0 0
        %595 = vmatpush1.bf16.msra.mxu0 0
        %596 = vmatprep.subr.bf16.mxu0 0
        %597 = vmatpush1.bf16.msra.mxu0 0
        %598 = vmatprep.subr.bf16.mxu0 0
        %599 = vmatpush1.bf16.msra.mxu0 0
        %600 = vmatprep.subr.bf16.mxu0 0
        %601 = vmatpush1.bf16.msra.mxu0 0
        %602 = vmatprep.mubr.bf16.mxu0 0
        %603 = vmatmul.mubr.bf16.gmra.mrb[0].mxu0 %v502
        %v604 = vpop.f32.mrb[0].mxu0
        %v605 = vadd.f32 %v556, %v604
        %v606 = vpop.f32.mrb[0].mxu0
        %v607 = vpop.f32.mrb[0].mxu0
        %v608 = vpop.f32.mrb[0].mxu0
        %609 = vdwg.mxu0
        %v610 = vpack.c.bf16 %v605, %v605
        %s611 = scalar_lea.vmem %s1, 32
        %v612 = vld [vmem:[%s611] sm:$0xf]
        %v613 = vld [vmem:[%s611 + $0x4] sm:$0xf]
        %v614 = vld [vmem:[%s611 + $0x8] sm:$0xf]
        %v615 = vld [vmem:[%s611 + $0xc] sm:$0xf]
        %s616 = scalar_lea.vmem %s2, 2
        %v617 = vld [vmem:[%s616] sm:$0x1]
        %v619 = vlaneseq
        %v620 = vshrl.u32 %v619, 7
        %v621 = vsub.s32 0, %v620
        %v622 = vrot.slane %v617, %v621
        %v628 = vunpack.c.l.b16 %v612
        %v629 = vunpack.c.l.b16 %v613
        %v630 = vunpack.c.l.b16 %v614
        %v631 = vunpack.c.l.b16 %v615
        %v632 = vpack.c.b16 %v629, %v628
        %v633 = vpack.c.b16 %v631, %v630
        %636 = vmatprep.subr.bf16.mxu0 0
        %637 = vmatpush1.bf16.msra.mxu0 %v632
        %638 = vmatprep.subr.bf16.mxu0 0
        %639 = vmatpush1.bf16.msra.mxu0 %v633
        %640 = vmatprep.subr.bf16.mxu0 0
        %641 = vmatpush1.bf16.msra.mxu0 0
        %642 = vmatprep.subr.bf16.mxu0 0
        %643 = vmatpush1.bf16.msra.mxu0 0
        %644 = vmatprep.subr.bf16.mxu0 0
        %645 = vmatpush1.bf16.msra.mxu0 0
        %646 = vmatprep.subr.bf16.mxu0 0
        %647 = vmatpush1.bf16.msra.mxu0 0
        %648 = vmatprep.subr.bf16.mxu0 0
        %649 = vmatpush1.bf16.msra.mxu0 0
        %650 = vmatprep.subr.bf16.mxu0 0
        %651 = vmatpush1.bf16.msra.mxu0 0
        %652 = vmatprep.subr.bf16.mxu0 0
        %653 = vmatpush1.bf16.msra.mxu0 0
        %654 = vmatprep.subr.bf16.mxu0 0
        %655 = vmatpush1.bf16.msra.mxu0 0
        %656 = vmatprep.subr.bf16.mxu0 0
        %657 = vmatpush1.bf16.msra.mxu0 0
        %658 = vmatprep.subr.bf16.mxu0 0
        %659 = vmatpush1.bf16.msra.mxu0 0
        %660 = vmatprep.subr.bf16.mxu0 0
        %661 = vmatpush1.bf16.msra.mxu0 0
        %662 = vmatprep.subr.bf16.mxu0 0
        %663 = vmatpush1.bf16.msra.mxu0 0
        %664 = vmatprep.subr.bf16.mxu0 0
        %665 = vmatpush1.bf16.msra.mxu0 0
        %666 = vmatprep.subr.bf16.mxu0 0
        %667 = vmatpush1.bf16.msra.mxu0 0
        %668 = vmatprep.mubr.bf16.mxu0 0
        %669 = vmatmul.mubr.bf16.gmra.mrb[0].mxu0 %v502
        %v670 = vpop.f32.mrb[0].mxu0
        %v671 = vadd.f32 %v622, %v670
        %v672 = vpop.f32.mrb[0].mxu0
        %v673 = vpop.f32.mrb[0].mxu0
        %v674 = vpop.f32.mrb[0].mxu0
        %675 = vdwg.mxu0
        %v676 = vpack.c.bf16 %v671, %v671
        %s677 = scalar_lea.vmem %s1, 48
        %v678 = vld [vmem:[%s677] sm:$0xf]
        %v679 = vld [vmem:[%s677 + $0x4] sm:$0xf]
        %v680 = vld [vmem:[%s677 + $0x8] sm:$0xf]
        %v681 = vld [vmem:[%s677 + $0xc] sm:$0xf]
        %s682 = scalar_lea.vmem %s2, 3
        %v683 = vld [vmem:[%s682] sm:$0x1]
        %v685 = vlaneseq
        %v686 = vshrl.u32 %v685, 7
        %v687 = vsub.s32 0, %v686
        %v688 = vrot.slane %v683, %v687
        %v694 = vunpack.c.l.b16 %v678
        %v695 = vunpack.c.l.b16 %v679
        %v696 = vunpack.c.l.b16 %v680
        %v697 = vunpack.c.l.b16 %v681
        %v698 = vpack.c.b16 %v695, %v694
        %v699 = vpack.c.b16 %v697, %v696
        %702 = vmatprep.subr.bf16.mxu0 0
        %703 = vmatpush1.bf16.msra.mxu0 %v698
        %704 = vmatprep.subr.bf16.mxu0 0
        %705 = vmatpush1.bf16.msra.mxu0 %v699
        %706 = vmatprep.subr.bf16.mxu0 0
        %707 = vmatpush1.bf16.msra.mxu0 0
        %708 = vmatprep.subr.bf16.mxu0 0
        %709 = vmatpush1.bf16.msra.mxu0 0
        %710 = vmatprep.subr.bf16.mxu0 0
        %711 = vmatpush1.bf16.msra.mxu0 0
        %712 = vmatprep.subr.bf16.mxu0 0
        %713 = vmatpush1.bf16.msra.mxu0 0
        %714 = vmatprep.subr.bf16.mxu0 0
        %715 = vmatpush1.bf16.msra.mxu0 0
        %716 = vmatprep.subr.bf16.mxu0 0
        %717 = vmatpush1.bf16.msra.mxu0 0
        %718 = vmatprep.subr.bf16.mxu0 0
        %719 = vmatpush1.bf16.msra.mxu0 0
        %720 = vmatprep.subr.bf16.mxu0 0
        %721 = vmatpush1.bf16.msra.mxu0 0
        %722 = vmatprep.subr.bf16.mxu0 0
        %723 = vmatpush1.bf16.msra.mxu0 0
        %724 = vmatprep.subr.bf16.mxu0 0
        %725 = vmatpush1.bf16.msra.mxu0 0
        %726 = vmatprep.subr.bf16.mxu0 0
        %727 = vmatpush1.bf16.msra.mxu0 0
        %728 = vmatprep.subr.bf16.mxu0 0
        %729 = vmatpush1.bf16.msra.mxu0 0
        %730 = vmatprep.subr.bf16.mxu0 0
        %731 = vmatpush1.bf16.msra.mxu0 0
        %732 = vmatprep.subr.bf16.mxu0 0
        %733 = vmatpush1.bf16.msra.mxu0 0
        %734 = vmatprep.mubr.bf16.mxu0 0
        %735 = vmatmul.mubr.bf16.gmra.mrb[0].mxu0 %v502
        %v736 = vpop.f32.mrb[0].mxu0
        %v737 = vadd.f32 %v688, %v736
        %v738 = vpop.f32.mrb[0].mxu0
        %v739 = vpop.f32.mrb[0].mxu0
        %v740 = vpop.f32.mrb[0].mxu0
        %741 = vdwg.mxu0
        %v742 = vpack.c.bf16 %v737, %v737
        %s743 = scalar_lea.vmem %s1, 64
        %v744 = vld [vmem:[%s743] sm:$0xf]
        %v745 = vld [vmem:[%s743 + $0x4] sm:$0xf]
        %v746 = vld [vmem:[%s743 + $0x8] sm:$0xf]
        %v747 = vld [vmem:[%s743 + $0xc] sm:$0xf]
        %s748 = scalar_lea.vmem %s2, 4
        %v749 = vld [vmem:[%s748] sm:$0x1]
        %v751 = vlaneseq
        %v752 = vshrl.u32 %v751, 7
        %v753 = vsub.s32 0, %v752
        %v754 = vrot.slane %v749, %v753
        %v760 = vunpack.c.l.b16 %v744
        %v761 = vunpack.c.l.b16 %v745
        %v762 = vunpack.c.l.b16 %v746
        %v763 = vunpack.c.l.b16 %v747
        %v764 = vpack.c.b16 %v761, %v760
        %v765 = vpack.c.b16 %v763, %v762
        %768 = vmatprep.subr.bf16.mxu0 0
        %769 = vmatpush1.bf16.msra.mxu0 %v764
        %770 = vmatprep.subr.bf16.mxu0 0
        %771 = vmatpush1.bf16.msra.mxu0 %v765
        %772 = vmatprep.subr.bf16.mxu0 0
        %773 = vmatpush1.bf16.msra.mxu0 0
        %774 = vmatprep.subr.bf16.mxu0 0
        %775 = vmatpush1.bf16.msra.mxu0 0
        %776 = vmatprep.subr.bf16.mxu0 0
        %777 = vmatpush1.bf16.msra.mxu0 0
        %778 = vmatprep.subr.bf16.mxu0 0
        %779 = vmatpush1.bf16.msra.mxu0 0
        %780 = vmatprep.subr.bf16.mxu0 0
        %781 = vmatpush1.bf16.msra.mxu0 0
        %782 = vmatprep.subr.bf16.mxu0 0
        %783 = vmatpush1.bf16.msra.mxu0 0
        %784 = vmatprep.subr.bf16.mxu0 0
        %785 = vmatpush1.bf16.msra.mxu0 0
        %786 = vmatprep.subr.bf16.mxu0 0
        %787 = vmatpush1.bf16.msra.mxu0 0
        %788 = vmatprep.subr.bf16.mxu0 0
        %789 = vmatpush1.bf16.msra.mxu0 0
        %790 = vmatprep.subr.bf16.mxu0 0
        %791 = vmatpush1.bf16.msra.mxu0 0
        %792 = vmatprep.subr.bf16.mxu0 0
        %793 = vmatpush1.bf16.msra.mxu0 0
        %794 = vmatprep.subr.bf16.mxu0 0
        %795 = vmatpush1.bf16.msra.mxu0 0
        %796 = vmatprep.subr.bf16.mxu0 0
        %797 = vmatpush1.bf16.msra.mxu0 0
        %798 = vmatprep.subr.bf16.mxu0 0
        %799 = vmatpush1.bf16.msra.mxu0 0
        %800 = vmatprep.mubr.bf16.mxu0 0
        %801 = vmatmul.mubr.bf16.gmra.mrb[0].mxu0 %v502
        %v802 = vpop.f32.mrb[0].mxu0
        %v803 = vadd.f32 %v754, %v802
        %v804 = vpop.f32.mrb[0].mxu0
        %v805 = vpop.f32.mrb[0].mxu0
        %v806 = vpop.f32.mrb[0].mxu0
        %807 = vdwg.mxu0
        %v808 = vpack.c.bf16 %v803, %v803
        %s809 = scalar_lea.vmem %s1, 80
        %v810 = vld [vmem:[%s809] sm:$0xf]
        %v811 = vld [vmem:[%s809 + $0x4] sm:$0xf]
        %v812 = vld [vmem:[%s809 + $0x8] sm:$0xf]
        %v813 = vld [vmem:[%s809 + $0xc] sm:$0xf]
        %s814 = scalar_lea.vmem %s2, 5
        %v815 = vld [vmem:[%s814] sm:$0x1]
        %v817 = vlaneseq
        %v818 = vshrl.u32 %v817, 7
        %v819 = vsub.s32 0, %v818
        %v820 = vrot.slane %v815, %v819
        %v826 = vunpack.c.l.b16 %v810
        %v827 = vunpack.c.l.b16 %v811
        %v828 = vunpack.c.l.b16 %v812
        %v829 = vunpack.c.l.b16 %v813
        %v830 = vpack.c.b16 %v827, %v826
        %v831 = vpack.c.b16 %v829, %v828
        %834 = vmatprep.subr.bf16.mxu0 0
        %835 = vmatpush1.bf16.msra.mxu0 %v830
        %836 = vmatprep.subr.bf16.mxu0 0
        %837 = vmatpush1.bf16.msra.mxu0 %v831
        %838 = vmatprep.subr.bf16.mxu0 0
        %839 = vmatpush1.bf16.msra.mxu0 0
        %840 = vmatprep.subr.bf16.mxu0 0
        %841 = vmatpush1.bf16.msra.mxu0 0
        %842 = vmatprep.subr.bf16.mxu0 0
        %843 = vmatpush1.bf16.msra.mxu0 0
        %844 = vmatprep.subr.bf16.mxu0 0
        %845 = vmatpush1.bf16.msra.mxu0 0
        %846 = vmatprep.subr.bf16.mxu0 0
        %847 = vmatpush1.bf16.msra.mxu0 0
        %848 = vmatprep.subr.bf16.mxu0 0
        %849 = vmatpush1.bf16.msra.mxu0 0
        %850 = vmatprep.subr.bf16.mxu0 0
        %851 = vmatpush1.bf16.msra.mxu0 0
        %852 = vmatprep.subr.bf16.mxu0 0
        %853 = vmatpush1.bf16.msra.mxu0 0
        %854 = vmatprep.subr.bf16.mxu0 0
        %855 = vmatpush1.bf16.msra.mxu0 0
        %856 = vmatprep.subr.bf16.mxu0 0
        %857 = vmatpush1.bf16.msra.mxu0 0
        %858 = vmatprep.subr.bf16.mxu0 0
        %859 = vmatpush1.bf16.msra.mxu0 0
        %860 = vmatprep.subr.bf16.mxu0 0
        %861 = vmatpush1.bf16.msra.mxu0 0
        %862 = vmatprep.subr.bf16.mxu0 0
        %863 = vmatpush1.bf16.msra.mxu0 0
        %864 = vmatprep.subr.bf16.mxu0 0
        %865 = vmatpush1.bf16.msra.mxu0 0
        %866 = vmatprep.mubr.bf16.mxu0 0
        %867 = vmatmul.mubr.bf16.gmra.mrb[0].mxu0 %v502
        %v868 = vpop.f32.mrb[0].mxu0
        %v869 = vadd.f32 %v820, %v868
        %v870 = vpop.f32.mrb[0].mxu0
        %v871 = vpop.f32.mrb[0].mxu0
        %v872 = vpop.f32.mrb[0].mxu0
        %873 = vdwg.mxu0
        %v874 = vpack.c.bf16 %v869, %v869
        %s875 = scalar_lea.vmem %s1, 96
        %v876 = vld [vmem:[%s875] sm:$0xf]
        %v877 = vld [vmem:[%s875 + $0x4] sm:$0xf]
        %v878 = vld [vmem:[%s875 + $0x8] sm:$0xf]
        %v879 = vld [vmem:[%s875 + $0xc] sm:$0xf]
        %s880 = scalar_lea.vmem %s2, 6
        %v881 = vld [vmem:[%s880] sm:$0x1]
        %v883 = vlaneseq
        %v884 = vshrl.u32 %v883, 7
        %v885 = vsub.s32 0, %v884
        %v886 = vrot.slane %v881, %v885
        %v892 = vunpack.c.l.b16 %v876
        %v893 = vunpack.c.l.b16 %v877
        %v894 = vunpack.c.l.b16 %v878
        %v895 = vunpack.c.l.b16 %v879
        %v896 = vpack.c.b16 %v893, %v892
        %v897 = vpack.c.b16 %v895, %v894
        %900 = vmatprep.subr.bf16.mxu0 0
        %901 = vmatpush1.bf16.msra.mxu0 %v896
        %902 = vmatprep.subr.bf16.mxu0 0
        %903 = vmatpush1.bf16.msra.mxu0 %v897
        %904 = vmatprep.subr.bf16.mxu0 0
        %905 = vmatpush1.bf16.msra.mxu0 0
        %906 = vmatprep.subr.bf16.mxu0 0
        %907 = vmatpush1.bf16.msra.mxu0 0
        %908 = vmatprep.subr.bf16.mxu0 0
        %909 = vmatpush1.bf16.msra.mxu0 0
        %910 = vmatprep.subr.bf16.mxu0 0
        %911 = vmatpush1.bf16.msra.mxu0 0
        %912 = vmatprep.subr.bf16.mxu0 0
        %913 = vmatpush1.bf16.msra.mxu0 0
        %914 = vmatprep.subr.bf16.mxu0 0
        %915 = vmatpush1.bf16.msra.mxu0 0
        %916 = vmatprep.subr.bf16.mxu0 0
        %917 = vmatpush1.bf16.msra.mxu0 0
        %918 = vmatprep.subr.bf16.mxu0 0
        %919 = vmatpush1.bf16.msra.mxu0 0
        %920 = vmatprep.subr.bf16.mxu0 0
        %921 = vmatpush1.bf16.msra.mxu0 0
        %922 = vmatprep.subr.bf16.mxu0 0
        %923 = vmatpush1.bf16.msra.mxu0 0
        %924 = vmatprep.subr.bf16.mxu0 0
        %925 = vmatpush1.bf16.msra.mxu0 0
        %926 = vmatprep.subr.bf16.mxu0 0
        %927 = vmatpush1.bf16.msra.mxu0 0
        %928 = vmatprep.subr.bf16.mxu0 0
        %929 = vmatpush1.bf16.msra.mxu0 0
        %930 = vmatprep.subr.bf16.mxu0 0
        %931 = vmatpush1.bf16.msra.mxu0 0
        %932 = vmatprep.mubr.bf16.mxu0 0
        %933 = vmatmul.mubr.bf16.gmra.mrb[0].mxu0 %v502
        %v934 = vpop.f32.mrb[0].mxu0
        %v935 = vadd.f32 %v886, %v934
        %v936 = vpop.f32.mrb[0].mxu0
        %v937 = vpop.f32.mrb[0].mxu0
        %v938 = vpop.f32.mrb[0].mxu0
        %939 = vdwg.mxu0
        %v940 = vpack.c.bf16 %v935, %v935
        %s941 = scalar_lea.vmem %s1, 112
        %v942 = vld [vmem:[%s941] sm:$0xf]
        %v943 = vld [vmem:[%s941 + $0x4] sm:$0xf]
        %v944 = vld [vmem:[%s941 + $0x8] sm:$0xf]
        %v945 = vld [vmem:[%s941 + $0xc] sm:$0xf]
        %s946 = scalar_lea.vmem %s2, 7
        %v947 = vld [vmem:[%s946] sm:$0x1]
        %v949 = vlaneseq
        %v950 = vshrl.u32 %v949, 7
        %v951 = vsub.s32 0, %v950
        %v952 = vrot.slane %v947, %v951
        %v958 = vunpack.c.l.b16 %v942
        %v959 = vunpack.c.l.b16 %v943
        %v960 = vunpack.c.l.b16 %v944
        %v961 = vunpack.c.l.b16 %v945
        %v962 = vpack.c.b16 %v959, %v958
        %v963 = vpack.c.b16 %v961, %v960
        %966 = vmatprep.subr.bf16.mxu0 0
        %967 = vmatpush1.bf16.msra.mxu0 %v962
        %968 = vmatprep.subr.bf16.mxu0 0
        %969 = vmatpush1.bf16.msra.mxu0 %v963
        %970 = vmatprep.subr.bf16.mxu0 0
        %971 = vmatpush1.bf16.msra.mxu0 0
        %972 = vmatprep.subr.bf16.mxu0 0
        %973 = vmatpush1.bf16.msra.mxu0 0
        %974 = vmatprep.subr.bf16.mxu0 0
        %975 = vmatpush1.bf16.msra.mxu0 0
        %976 = vmatprep.subr.bf16.mxu0 0
        %977 = vmatpush1.bf16.msra.mxu0 0
        %978 = vmatprep.subr.bf16.mxu0 0
        %979 = vmatpush1.bf16.msra.mxu0 0
        %980 = vmatprep.subr.bf16.mxu0 0
        %981 = vmatpush1.bf16.msra.mxu0 0
        %982 = vmatprep.subr.bf16.mxu0 0
        %983 = vmatpush1.bf16.msra.mxu0 0
        %984 = vmatprep.subr.bf16.mxu0 0
        %985 = vmatpush1.bf16.msra.mxu0 0
        %986 = vmatprep.subr.bf16.mxu0 0
        %987 = vmatpush1.bf16.msra.mxu0 0
        %988 = vmatprep.subr.bf16.mxu0 0
        %989 = vmatpush1.bf16.msra.mxu0 0
        %990 = vmatprep.subr.bf16.mxu0 0
        %991 = vmatpush1.bf16.msra.mxu0 0
        %992 = vmatprep.subr.bf16.mxu0 0
        %993 = vmatpush1.bf16.msra.mxu0 0
        %994 = vmatprep.subr.bf16.mxu0 0
        %995 = vmatpush1.bf16.msra.mxu0 0
        %996 = vmatprep.subr.bf16.mxu0 0
        %997 = vmatpush1.bf16.msra.mxu0 0
        %998 = vmatprep.mubr.bf16.mxu0 0
        %999 = vmatmul.mubr.bf16.gmra.mrb[0].mxu0 %v502
        %v1000 = vpop.f32.mrb[0].mxu0
        %v1001 = vadd.f32 %v952, %v1000
        %v1002 = vpop.f32.mrb[0].mxu0
        %v1003 = vpop.f32.mrb[0].mxu0
        %v1004 = vpop.f32.mrb[0].mxu0
        %1005 = vdwg.mxu0
        %v1006 = vpack.c.bf16 %v1001, %v1001
        %s1007 = scalar_lea.vmem %s1, 128
        %v1008 = vld [vmem:[%s1007] sm:$0xf]
        %v1009 = vld [vmem:[%s1007 + $0x4] sm:$0xf]
        %v1010 = vld [vmem:[%s1007 + $0x8] sm:$0xf]
        %v1011 = vld [vmem:[%s1007 + $0xc] sm:$0xf]
        %s1012 = scalar_lea.vmem %s2, 8
        %v1013 = vld [vmem:[%s1012] sm:$0x1]
        %v1015 = vlaneseq
        %v1016 = vshrl.u32 %v1015, 7
        %v1017 = vsub.s32 0, %v1016
        %v1018 = vrot.slane %v1013, %v1017
        %v1024 = vunpack.c.l.b16 %v1008
        %v1025 = vunpack.c.l.b16 %v1009
        %v1026 = vunpack.c.l.b16 %v1010
        %v1027 = vunpack.c.l.b16 %v1011
        %v1028 = vpack.c.b16 %v1025, %v1024
        %v1029 = vpack.c.b16 %v1027, %v1026
        %1032 = vmatprep.subr.bf16.mxu0 0
        %1033 = vmatpush1.bf16.msra.mxu0 %v1028
        %1034 = vmatprep.subr.bf16.mxu0 0
        %1035 = vmatpush1.bf16.msra.mxu0 %v1029
        %1036 = vmatprep.subr.bf16.mxu0 0
        %1037 = vmatpush1.bf16.msra.mxu0 0
        %1038 = vmatprep.subr.bf16.mxu0 0
        %1039 = vmatpush1.bf16.msra.mxu0 0
        %1040 = vmatprep.subr.bf16.mxu0 0
        %1041 = vmatpush1.bf16.msra.mxu0 0
        %1042 = vmatprep.subr.bf16.mxu0 0
        %1043 = vmatpush1.bf16.msra.mxu0 0
        %1044 = vmatprep.subr.bf16.mxu0 0
        %1045 = vmatpush1.bf16.msra.mxu0 0
        %1046 = vmatprep.subr.bf16.mxu0 0
        %1047 = vmatpush1.bf16.msra.mxu0 0
        %1048 = vmatprep.subr.bf16.mxu0 0
        %1049 = vmatpush1.bf16.msra.mxu0 0
        %1050 = vmatprep.subr.bf16.mxu0 0
        %1051 = vmatpush1.bf16.msra.mxu0 0
        %1052 = vmatprep.subr.bf16.mxu0 0
        %1053 = vmatpush1.bf16.msra.mxu0 0
        %1054 = vmatprep.subr.bf16.mxu0 0
        %1055 = vmatpush1.bf16.msra.mxu0 0
        %1056 = vmatprep.subr.bf16.mxu0 0
        %1057 = vmatpush1.bf16.msra.mxu0 0
        %1058 = vmatprep.subr.bf16.mxu0 0
        %1059 = vmatpush1.bf16.msra.mxu0 0
        %1060 = vmatprep.subr.bf16.mxu0 0
        %1061 = vmatpush1.bf16.msra.mxu0 0
        %1062 = vmatprep.subr.bf16.mxu0 0
        %1063 = vmatpush1.bf16.msra.mxu0 0
        %1064 = vmatprep.mubr.bf16.mxu0 0
        %1065 = vmatmul.mubr.bf16.gmra.mrb[0].mxu0 %v502
        %v1066 = vpop.f32.mrb[0].mxu0
        %v1067 = vadd.f32 %v1018, %v1066
        %v1068 = vpop.f32.mrb[0].mxu0
        %v1069 = vpop.f32.mrb[0].mxu0
        %v1070 = vpop.f32.mrb[0].mxu0
        %1071 = vdwg.mxu0
        %v1072 = vpack.c.bf16 %v1067, %v1067
        %s1073 = scalar_lea.vmem %s1, 144
        %v1074 = vld [vmem:[%s1073] sm:$0xf]
        %v1075 = vld [vmem:[%s1073 + $0x4] sm:$0xf]
        %v1076 = vld [vmem:[%s1073 + $0x8] sm:$0xf]
        %v1077 = vld [vmem:[%s1073 + $0xc] sm:$0xf]
        %s1078 = scalar_lea.vmem %s2, 9
        %v1079 = vld [vmem:[%s1078] sm:$0x1]
        %v1081 = vlaneseq
        %v1082 = vshrl.u32 %v1081, 7
        %v1083 = vsub.s32 0, %v1082
        %v1084 = vrot.slane %v1079, %v1083
        %v1090 = vunpack.c.l.b16 %v1074
        %v1091 = vunpack.c.l.b16 %v1075
        %v1092 = vunpack.c.l.b16 %v1076
        %v1093 = vunpack.c.l.b16 %v1077
        %v1094 = vpack.c.b16 %v1091, %v1090
        %v1095 = vpack.c.b16 %v1093, %v1092
        %1098 = vmatprep.subr.bf16.mxu0 0
        %1099 = vmatpush1.bf16.msra.mxu0 %v1094
        %1100 = vmatprep.subr.bf16.mxu0 0
        %1101 = vmatpush1.bf16.msra.mxu0 %v1095
        %1102 = vmatprep.subr.bf16.mxu0 0
        %1103 = vmatpush1.bf16.msra.mxu0 0
        %1104 = vmatprep.subr.bf16.mxu0 0
        %1105 = vmatpush1.bf16.msra.mxu0 0
        %1106 = vmatprep.subr.bf16.mxu0 0
        %1107 = vmatpush1.bf16.msra.mxu0 0
        %1108 = vmatprep.subr.bf16.mxu0 0
        %1109 = vmatpush1.bf16.msra.mxu0 0
        %1110 = vmatprep.subr.bf16.mxu0 0
        %1111 = vmatpush1.bf16.msra.mxu0 0
        %1112 = vmatprep.subr.bf16.mxu0 0
        %1113 = vmatpush1.bf16.msra.mxu0 0
        %1114 = vmatprep.subr.bf16.mxu0 0
        %1115 = vmatpush1.bf16.msra.mxu0 0
        %1116 = vmatprep.subr.bf16.mxu0 0
        %1117 = vmatpush1.bf16.msra.mxu0 0
        %1118 = vmatprep.subr.bf16.mxu0 0
        %1119 = vmatpush1.bf16.msra.mxu0 0
        %1120 = vmatprep.subr.bf16.mxu0 0
        %1121 = vmatpush1.bf16.msra.mxu0 0
        %1122 = vmatprep.subr.bf16.mxu0 0
        %1123 = vmatpush1.bf16.msra.mxu0 0
        %1124 = vmatprep.subr.bf16.mxu0 0
        %1125 = vmatpush1.bf16.msra.mxu0 0
        %1126 = vmatprep.subr.bf16.mxu0 0
        %1127 = vmatpush1.bf16.msra.mxu0 0
        %1128 = vmatprep.subr.bf16.mxu0 0
        %1129 = vmatpush1.bf16.msra.mxu0 0
        %1130 = vmatprep.mubr.bf16.mxu0 0
        %1131 = vmatmul.mubr.bf16.gmra.mrb[0].mxu0 %v502
        %v1132 = vpop.f32.mrb[0].mxu0
        %v1133 = vadd.f32 %v1084, %v1132
        %v1134 = vpop.f32.mrb[0].mxu0
        %v1135 = vpop.f32.mrb[0].mxu0
        %v1136 = vpop.f32.mrb[0].mxu0
        %1137 = vdwg.mxu0
        %v1138 = vpack.c.bf16 %v1133, %v1133
        %s1139 = scalar_lea.vmem %s1, 160
        %v1140 = vld [vmem:[%s1139] sm:$0xf]
        %v1141 = vld [vmem:[%s1139 + $0x4] sm:$0xf]
        %v1142 = vld [vmem:[%s1139 + $0x8] sm:$0xf]
        %v1143 = vld [vmem:[%s1139 + $0xc] sm:$0xf]
        %s1144 = scalar_lea.vmem %s2, 10
        %v1145 = vld [vmem:[%s1144] sm:$0x1]
        %v1147 = vlaneseq
        %v1148 = vshrl.u32 %v1147, 7
        %v1149 = vsub.s32 0, %v1148
        %v1150 = vrot.slane %v1145, %v1149
        %v1156 = vunpack.c.l.b16 %v1140
        %v1157 = vunpack.c.l.b16 %v1141
        %v1158 = vunpack.c.l.b16 %v1142
        %v1159 = vunpack.c.l.b16 %v1143
        %v1160 = vpack.c.b16 %v1157, %v1156
        %v1161 = vpack.c.b16 %v1159, %v1158
        %1164 = vmatprep.subr.bf16.mxu0 0
        %1165 = vmatpush1.bf16.msra.mxu0 %v1160
        %1166 = vmatprep.subr.bf16.mxu0 0
        %1167 = vmatpush1.bf16.msra.mxu0 %v1161
        %1168 = vmatprep.subr.bf16.mxu0 0
        %1169 = vmatpush1.bf16.msra.mxu0 0
        %1170 = vmatprep.subr.bf16.mxu0 0
        %1171 = vmatpush1.bf16.msra.mxu0 0
        %1172 = vmatprep.subr.bf16.mxu0 0
        %1173 = vmatpush1.bf16.msra.mxu0 0
        %1174 = vmatprep.subr.bf16.mxu0 0
        %1175 = vmatpush1.bf16.msra.mxu0 0
        %1176 = vmatprep.subr.bf16.mxu0 0
        %1177 = vmatpush1.bf16.msra.mxu0 0
        %1178 = vmatprep.subr.bf16.mxu0 0
        %1179 = vmatpush1.bf16.msra.mxu0 0
        %1180 = vmatprep.subr.bf16.mxu0 0
        %1181 = vmatpush1.bf16.msra.mxu0 0
        %1182 = vmatprep.subr.bf16.mxu0 0
        %1183 = vmatpush1.bf16.msra.mxu0 0
        %1184 = vmatprep.subr.bf16.mxu0 0
        %1185 = vmatpush1.bf16.msra.mxu0 0
        %1186 = vmatprep.subr.bf16.mxu0 0
        %1187 = vmatpush1.bf16.msra.mxu0 0
        %1188 = vmatprep.subr.bf16.mxu0 0
        %1189 = vmatpush1.bf16.msra.mxu0 0
        %1190 = vmatprep.subr.bf16.mxu0 0
        %1191 = vmatpush1.bf16.msra.mxu0 0
        %1192 = vmatprep.subr.bf16.mxu0 0
        %1193 = vmatpush1.bf16.msra.mxu0 0
        %1194 = vmatprep.subr.bf16.mxu0 0
        %1195 = vmatpush1.bf16.msra.mxu0 0
        %1196 = vmatprep.mubr.bf16.mxu0 0
        %1197 = vmatmul.mubr.bf16.gmra.mrb[0].mxu0 %v502
        %v1198 = vpop.f32.mrb[0].mxu0
        %v1199 = vadd.f32 %v1150, %v1198
        %v1200 = vpop.f32.mrb[0].mxu0
        %v1201 = vpop.f32.mrb[0].mxu0
        %v1202 = vpop.f32.mrb[0].mxu0
        %1203 = vdwg.mxu0
        %v1204 = vpack.c.bf16 %v1199, %v1199
        %s1205 = scalar_lea.vmem %s1, 176
        %v1206 = vld [vmem:[%s1205] sm:$0xf]
        %v1207 = vld [vmem:[%s1205 + $0x4] sm:$0xf]
        %v1208 = vld [vmem:[%s1205 + $0x8] sm:$0xf]
        %v1209 = vld [vmem:[%s1205 + $0xc] sm:$0xf]
        %s1210 = scalar_lea.vmem %s2, 11
        %v1211 = vld [vmem:[%s1210] sm:$0x1]
        %v1213 = vlaneseq
        %v1214 = vshrl.u32 %v1213, 7
        %v1215 = vsub.s32 0, %v1214
        %v1216 = vrot.slane %v1211, %v1215
        %v1222 = vunpack.c.l.b16 %v1206
        %v1223 = vunpack.c.l.b16 %v1207
        %v1224 = vunpack.c.l.b16 %v1208
        %v1225 = vunpack.c.l.b16 %v1209
        %v1226 = vpack.c.b16 %v1223, %v1222
        %v1227 = vpack.c.b16 %v1225, %v1224
        %1230 = vmatprep.subr.bf16.mxu0 0
        %1231 = vmatpush1.bf16.msra.mxu0 %v1226
        %1232 = vmatprep.subr.bf16.mxu0 0
        %1233 = vmatpush1.bf16.msra.mxu0 %v1227
        %1234 = vmatprep.subr.bf16.mxu0 0
        %1235 = vmatpush1.bf16.msra.mxu0 0
        %1236 = vmatprep.subr.bf16.mxu0 0
        %1237 = vmatpush1.bf16.msra.mxu0 0
        %1238 = vmatprep.subr.bf16.mxu0 0
        %1239 = vmatpush1.bf16.msra.mxu0 0
        %1240 = vmatprep.subr.bf16.mxu0 0
        %1241 = vmatpush1.bf16.msra.mxu0 0
        %1242 = vmatprep.subr.bf16.mxu0 0
        %1243 = vmatpush1.bf16.msra.mxu0 0
        %1244 = vmatprep.subr.bf16.mxu0 0
        %1245 = vmatpush1.bf16.msra.mxu0 0
        %1246 = vmatprep.subr.bf16.mxu0 0
        %1247 = vmatpush1.bf16.msra.mxu0 0
        %1248 = vmatprep.subr.bf16.mxu0 0
        %1249 = vmatpush1.bf16.msra.mxu0 0
        %1250 = vmatprep.subr.bf16.mxu0 0
        %1251 = vmatpush1.bf16.msra.mxu0 0
        %1252 = vmatprep.subr.bf16.mxu0 0
        %1253 = vmatpush1.bf16.msra.mxu0 0
        %1254 = vmatprep.subr.bf16.mxu0 0
        %1255 = vmatpush1.bf16.msra.mxu0 0
        %1256 = vmatprep.subr.bf16.mxu0 0
        %1257 = vmatpush1.bf16.msra.mxu0 0
        %1258 = vmatprep.subr.bf16.mxu0 0
        %1259 = vmatpush1.bf16.msra.mxu0 0
        %1260 = vmatprep.subr.bf16.mxu0 0
        %1261 = vmatpush1.bf16.msra.mxu0 0
        %1262 = vmatprep.mubr.bf16.mxu0 0
        %1263 = vmatmul.mubr.bf16.gmra.mrb[0].mxu0 %v502
        %v1264 = vpop.f32.mrb[0].mxu0
        %v1265 = vadd.f32 %v1216, %v1264
        %v1266 = vpop.f32.mrb[0].mxu0
        %v1267 = vpop.f32.mrb[0].mxu0
        %v1268 = vpop.f32.mrb[0].mxu0
        %1269 = vdwg.mxu0
        %v1270 = vpack.c.bf16 %v1265, %v1265
        %vm1271 = vcmask 64512
        %v1273 = vsel %vm1271, %v544, 0
        %v1276 = vsel %vm1271, %v808, 0
        %1278 = vmatprep.subr.bf16.mxu0 0
        %1279 = vmatpush1.bf16.xpose.msra.mxu0 %v1276
        %1280 = vmatprep.subr.bf16.mxu0 0
        %1281 = vmatpush1.bf16.xpose.msra.mxu0 0
        %1282 = vmatprep.subr.bf16.mxu0 0
        %1283 = vmatpush1.bf16.xpose.msra.mxu0 0
        %1284 = vmatprep.subr.bf16.mxu0 0
        %1285 = vmatpush1.bf16.xpose.msra.mxu0 0
        %1286 = vmatprep.subr.bf16.mxu0 0
        %1287 = vmatpush1.bf16.xpose.msra.mxu0 0
        %1288 = vmatprep.subr.bf16.mxu0 0
        %1289 = vmatpush1.bf16.xpose.msra.mxu0 0
        %1290 = vmatprep.subr.bf16.mxu0 0
        %1291 = vmatpush1.bf16.xpose.msra.mxu0 0
        %1292 = vmatprep.subr.bf16.mxu0 0
        %1293 = vmatpush1.bf16.xpose.msra.mxu0 0
        %1294 = vmatprep.subr.bf16.mxu0 0
        %1295 = vmatpush1.bf16.xpose.msra.mxu0 0
        %1296 = vmatprep.subr.bf16.mxu0 0
        %1297 = vmatpush1.bf16.xpose.msra.mxu0 0
        %1298 = vmatprep.subr.bf16.mxu0 0
        %1299 = vmatpush1.bf16.xpose.msra.mxu0 0
        %1300 = vmatprep.subr.bf16.mxu0 0
        %1301 = vmatpush1.bf16.xpose.msra.mxu0 0
        %1302 = vmatprep.subr.bf16.mxu0 0
        %1303 = vmatpush1.bf16.xpose.msra.mxu0 0
        %1304 = vmatprep.subr.bf16.mxu0 0
        %1305 = vmatpush1.bf16.xpose.msra.mxu0 0
        %1306 = vmatprep.subr.bf16.mxu0 0
        %1307 = vmatpush1.bf16.xpose.msra.mxu0 0
        %1308 = vmatprep.subr.bf16.mxu0 0
        %1309 = vmatpush1.bf16.xpose.msra.mxu0 0
        %1310 = vmatprep.mubr.bf16.mxu0 0
        %1311 = vmatmul.mubr.bf16.gmra.mrb[0].mxu0 %v1273
        %v1312 = vpop.f32.mrb[0].mxu0
        %v1313 = vadd.f32 0.0, %v1312
        %v1314 = vpop.f32.mrb[0].mxu0
        %v1315 = vpop.f32.mrb[0].mxu0
        %v1316 = vpop.f32.mrb[0].mxu0
        %1317 = vdwg.mxu0
        %v1319 = vsel %vm1271, %v610, 0
        %v1322 = vsel %vm1271, %v874, 0
        %1324 = vmatprep.subr.bf16.mxu0 0
        %1325 = vmatpush1.bf16.xpose.msra.mxu0 %v1322
        %1326 = vmatprep.subr.bf16.mxu0 0
        %1327 = vmatpush1.bf16.xpose.msra.mxu0 0
        %1328 = vmatprep.subr.bf16.mxu0 0
        %1329 = vmatpush1.bf16.xpose.msra.mxu0 0
        %1330 = vmatprep.subr.bf16.mxu0 0
        %1331 = vmatpush1.bf16.xpose.msra.mxu0 0
        %1332 = vmatprep.subr.bf16.mxu0 0
        %1333 = vmatpush1.bf16.xpose.msra.mxu0 0
        %1334 = vmatprep.subr.bf16.mxu0 0
        %1335 = vmatpush1.bf16.xpose.msra.mxu0 0
        %1336 = vmatprep.subr.bf16.mxu0 0
        %1337 = vmatpush1.bf16.xpose.msra.mxu0 0
        %1338 = vmatprep.subr.bf16.mxu0 0
        %1339 = vmatpush1.bf16.xpose.msra.mxu0 0
        %1340 = vmatprep.subr.bf16.mxu0 0
        %1341 = vmatpush1.bf16.xpose.msra.mxu0 0
        %1342 = vmatprep.subr.bf16.mxu0 0
        %1343 = vmatpush1.bf16.xpose.msra.mxu0 0
        %1344 = vmatprep.subr.bf16.mxu0 0
        %1345 = vmatpush1.bf16.xpose.msra.mxu0 0
        %1346 = vmatprep.subr.bf16.mxu0 0
        %1347 = vmatpush1.bf16.xpose.msra.mxu0 0
        %1348 = vmatprep.subr.bf16.mxu0 0
        %1349 = vmatpush1.bf16.xpose.msra.mxu0 0
        %1350 = vmatprep.subr.bf16.mxu0 0
        %1351 = vmatpush1.bf16.xpose.msra.mxu0 0
        %1352 = vmatprep.subr.bf16.mxu0 0
        %1353 = vmatpush1.bf16.xpose.msra.mxu0 0
        %1354 = vmatprep.subr.bf16.mxu0 0
        %1355 = vmatpush1.bf16.xpose.msra.mxu0 0
        %1356 = vmatprep.mubr.bf16.mxu0 0
        %1357 = vmatmul.mubr.bf16.gmra.mrb[0].mxu0 %v1319
        %v1358 = vpop.f32.mrb[0].mxu0
        %v1359 = vadd.f32 0.0, %v1358
        %v1360 = vpop.f32.mrb[0].mxu0
        %v1361 = vpop.f32.mrb[0].mxu0
        %v1362 = vpop.f32.mrb[0].mxu0
        %1363 = vdwg.mxu0
        %v1365 = vsel %vm1271, %v676, 0
        %v1368 = vsel %vm1271, %v940, 0
        %1370 = vmatprep.subr.bf16.mxu0 0
        %1371 = vmatpush1.bf16.xpose.msra.mxu0 %v1368
        %1372 = vmatprep.subr.bf16.mxu0 0
        %1373 = vmatpush1.bf16.xpose.msra.mxu0 0
        %1374 = vmatprep.subr.bf16.mxu0 0
        %1375 = vmatpush1.bf16.xpose.msra.mxu0 0
        %1376 = vmatprep.subr.bf16.mxu0 0
        %1377 = vmatpush1.bf16.xpose.msra.mxu0 0
        %1378 = vmatprep.subr.bf16.mxu0 0
        %1379 = vmatpush1.bf16.xpose.msra.mxu0 0
        %1380 = vmatprep.subr.bf16.mxu0 0
        %1381 = vmatpush1.bf16.xpose.msra.mxu0 0
        %1382 = vmatprep.subr.bf16.mxu0 0
        %1383 = vmatpush1.bf16.xpose.msra.mxu0 0
        %1384 = vmatprep.subr.bf16.mxu0 0
        %1385 = vmatpush1.bf16.xpose.msra.mxu0 0
        %1386 = vmatprep.subr.bf16.mxu0 0
        %1387 = vmatpush1.bf16.xpose.msra.mxu0 0
        %1388 = vmatprep.subr.bf16.mxu0 0
        %1389 = vmatpush1.bf16.xpose.msra.mxu0 0
        %1390 = vmatprep.subr.bf16.mxu0 0
        %1391 = vmatpush1.bf16.xpose.msra.mxu0 0
        %1392 = vmatprep.subr.bf16.mxu0 0
        %1393 = vmatpush1.bf16.xpose.msra.mxu0 0
        %1394 = vmatprep.subr.bf16.mxu0 0
        %1395 = vmatpush1.bf16.xpose.msra.mxu0 0
        %1396 = vmatprep.subr.bf16.mxu0 0
        %1397 = vmatpush1.bf16.xpose.msra.mxu0 0
        %1398 = vmatprep.subr.bf16.mxu0 0
        %1399 = vmatpush1.bf16.xpose.msra.mxu0 0
        %1400 = vmatprep.subr.bf16.mxu0 0
        %1401 = vmatpush1.bf16.xpose.msra.mxu0 0
        %1402 = vmatprep.mubr.bf16.mxu0 0
        %1403 = vmatmul.mubr.bf16.gmra.mrb[0].mxu0 %v1365
        %v1404 = vpop.f32.mrb[0].mxu0
        %v1405 = vadd.f32 0.0, %v1404
        %v1406 = vpop.f32.mrb[0].mxu0
        %v1407 = vpop.f32.mrb[0].mxu0
        %v1408 = vpop.f32.mrb[0].mxu0
        %1409 = vdwg.mxu0
        %v1411 = vsel %vm1271, %v742, 0
        %v1414 = vsel %vm1271, %v1006, 0
        %1416 = vmatprep.subr.bf16.mxu0 0
        %1417 = vmatpush1.bf16.xpose.msra.mxu0 %v1414
        %1418 = vmatprep.subr.bf16.mxu0 0
        %1419 = vmatpush1.bf16.xpose.msra.mxu0 0
        %1420 = vmatprep.subr.bf16.mxu0 0
        %1421 = vmatpush1.bf16.xpose.msra.mxu0 0
        %1422 = vmatprep.subr.bf16.mxu0 0
        %1423 = vmatpush1.bf16.xpose.msra.mxu0 0
        %1424 = vmatprep.subr.bf16.mxu0 0
        %1425 = vmatpush1.bf16.xpose.msra.mxu0 0
        %1426 = vmatprep.subr.bf16.mxu0 0
        %1427 = vmatpush1.bf16.xpose.msra.mxu0 0
        %1428 = vmatprep.subr.bf16.mxu0 0
        %1429 = vmatpush1.bf16.xpose.msra.mxu0 0
        %1430 = vmatprep.subr.bf16.mxu0 0
        %1431 = vmatpush1.bf16.xpose.msra.mxu0 0
        %1432 = vmatprep.subr.bf16.mxu0 0
        %1433 = vmatpush1.bf16.xpose.msra.mxu0 0
        %1434 = vmatprep.subr.bf16.mxu0 0
        %1435 = vmatpush1.bf16.xpose.msra.mxu0 0
        %1436 = vmatprep.subr.bf16.mxu0 0
        %1437 = vmatpush1.bf16.xpose.msra.mxu0 0
        %1438 = vmatprep.subr.bf16.mxu0 0
        %1439 = vmatpush1.bf16.xpose.msra.mxu0 0
        %1440 = vmatprep.subr.bf16.mxu0 0
        %1441 = vmatpush1.bf16.xpose.msra.mxu0 0
        %1442 = vmatprep.subr.bf16.mxu0 0
        %1443 = vmatpush1.bf16.xpose.msra.mxu0 0
        %1444 = vmatprep.subr.bf16.mxu0 0
        %1445 = vmatpush1.bf16.xpose.msra.mxu0 0
        %1446 = vmatprep.subr.bf16.mxu0 0
        %1447 = vmatpush1.bf16.xpose.msra.mxu0 0
        %1448 = vmatprep.mubr.bf16.mxu0 0
        %1449 = vmatmul.mubr.bf16.gmra.mrb[0].mxu0 %v1411
        %v1450 = vpop.f32.mrb[0].mxu0
        %v1451 = vadd.f32 0.0, %v1450
        %v1452 = vpop.f32.mrb[0].mxu0
        %v1453 = vpop.f32.mrb[0].mxu0
        %v1454 = vpop.f32.mrb[0].mxu0
        %1455 = vdwg.mxu0
        %v1456 = vsel %vm1271, %v1313, -inf
        %1457 = vmax.xlane.f32.xlu0 %v1456
        %v1458 = vpop.xlane.xlu0 %1457
        %v1459 = vsel %vm1271, %v1359, -inf
        %1460 = vmax.xlane.f32.xlu0 %v1459
        %v1461 = vpop.xlane.xlu0 %1460
        %v1462 = vsel %vm1271, %v1405, -inf
        %1463 = vmax.xlane.f32.xlu0 %v1462
        %v1464 = vpop.xlane.xlu0 %1463
        %v1465 = vsel %vm1271, %v1451, -inf
        %1466 = vmax.xlane.f32.xlu0 %v1465
        %v1467 = vpop.xlane.xlu0 %1466
        %v1468 = vsub.f32 %v1313, %v1458
        %v1469 = vsub.f32 %v1359, %v1461
        %v1470 = vsub.f32 %v1405, %v1464
        %v1471 = vsub.f32 %v1451, %v1467
        %v1472 = vmul.f32 %v1468, 1.442695
        %v1473 = vpow.pop %v1472
        %v1474 = vmul.f32 %v1469, 1.442695
        %v1475 = vpow.pop %v1474
        %v1476 = vmul.f32 %v1470, 1.442695
        %v1477 = vpow.pop %v1476
        %v1478 = vmul.f32 %v1471, 1.442695
        %v1479 = vpow.pop %v1478
        %v1480 = vsel %vm1271, %v1473, 0.0
        %1481 = vadd.xlane.f32.xlu0 %v1480
        %v1482 = vpop.xlane.xlu0 %1481
        %v1483 = vsel %vm1271, %v1475, 0.0
        %1484 = vadd.xlane.f32.xlu0 %v1483
        %v1485 = vpop.xlane.xlu0 %1484
        %v1486 = vsel %vm1271, %v1477, 0.0
        %1487 = vadd.xlane.f32.xlu0 %v1486
        %v1488 = vpop.xlane.xlu0 %1487
        %v1489 = vsel %vm1271, %v1479, 0.0
        %1490 = vadd.xlane.f32.xlu0 %v1489
        %v1491 = vpop.xlane.xlu0 %1490
        %v1492 = vrcp.pop %v1482
        %v1493 = vrcp.pop %v1485
        %v1494 = vrcp.pop %v1488
        %v1495 = vrcp.pop %v1491
        %v1496 = vmul.f32 %v1473, %v1492
        %v1497 = vmul.f32 %v1475, %v1493
        %v1498 = vmul.f32 %v1477, %v1494
        %v1499 = vmul.f32 %v1479, %v1495
        %v1500 = vsel %vm1271, %v1496, 0.0
        %v1501 = vsel %vm1271, %v1497, 0.0
        %v1502 = vadd.f32 %v1500, %v1501
        %v1503 = vsel %vm1271, %v1498, 0.0
        %v1504 = vadd.f32 %v1502, %v1503
        %v1505 = vsel %vm1271, %v1499, 0.0
        %v1506 = vadd.f32 %v1504, %v1505
        %v1507 = vrcp.pop 4.0
        %v1508 = vmul.f32 %v1506, %v1507
        %1509 = vst.msk [vmem:[%s469] sm:$0xff] %vm1271, %v1508
        %v1510 = vpack.c.bf16 %v1496, %v1496
        %v1511 = vpack.c.bf16 %v1497, %v1497
        %v1512 = vpack.c.bf16 %v1498, %v1498
        %v1513 = vpack.c.bf16 %v1499, %v1499
        %v1515 = vsel %vm1271, %v1510, 0
        %vm1517 = vcmask 1043456
        %v1519 = vsel %vm1517, %v1072, 0
        %1521 = vmatprep.subr.bf16.mxu0 0
        %1522 = vmatpush1.bf16.msra.mxu0 %v1519
        %1523 = vmatprep.subr.bf16.mxu0 0
        %1524 = vmatpush1.bf16.msra.mxu0 0
        %1525 = vmatprep.subr.bf16.mxu0 0
        %1526 = vmatpush1.bf16.msra.mxu0 0
        %1527 = vmatprep.subr.bf16.mxu0 0
        %1528 = vmatpush1.bf16.msra.mxu0 0
        %1529 = vmatprep.subr.bf16.mxu0 0
        %1530 = vmatpush1.bf16.msra.mxu0 0
        %1531 = vmatprep.subr.bf16.mxu0 0
        %1532 = vmatpush1.bf16.msra.mxu0 0
        %1533 = vmatprep.subr.bf16.mxu0 0
        %1534 = vmatpush1.bf16.msra.mxu0 0
        %1535 = vmatprep.subr.bf16.mxu0 0
        %1536 = vmatpush1.bf16.msra.mxu0 0
        %1537 = vmatprep.subr.bf16.mxu0 0
        %1538 = vmatpush1.bf16.msra.mxu0 0
        %1539 = vmatprep.subr.bf16.mxu0 0
        %1540 = vmatpush1.bf16.msra.mxu0 0
        %1541 = vmatprep.subr.bf16.mxu0 0
        %1542 = vmatpush1.bf16.msra.mxu0 0
        %1543 = vmatprep.subr.bf16.mxu0 0
        %1544 = vmatpush1.bf16.msra.mxu0 0
        %1545 = vmatprep.subr.bf16.mxu0 0
        %1546 = vmatpush1.bf16.msra.mxu0 0
        %1547 = vmatprep.subr.bf16.mxu0 0
        %1548 = vmatpush1.bf16.msra.mxu0 0
        %1549 = vmatprep.subr.bf16.mxu0 0
        %1550 = vmatpush1.bf16.msra.mxu0 0
        %1551 = vmatprep.subr.bf16.mxu0 0
        %1552 = vmatpush1.bf16.msra.mxu0 0
        %1553 = vmatprep.mubr.bf16.mxu0 0
        %1554 = vmatmul.mubr.bf16.gmra.mrb[0].mxu0 %v1515
        %v1555 = vpop.f32.mrb[0].mxu0
        %v1556 = vadd.f32 0.0, %v1555
        %v1557 = vpop.f32.mrb[0].mxu0
        %v1558 = vpop.f32.mrb[0].mxu0
        %v1559 = vpop.f32.mrb[0].mxu0
        %1560 = vdwg.mxu0
        %v1562 = vsel %vm1271, %v1511, 0
        %v1565 = vsel %vm1517, %v1138, 0
        %1567 = vmatprep.subr.bf16.mxu0 0
        %1568 = vmatpush1.bf16.msra.mxu0 %v1565
        %1569 = vmatprep.subr.bf16.mxu0 0
        %1570 = vmatpush1.bf16.msra.mxu0 0
        %1571 = vmatprep.subr.bf16.mxu0 0
        %1572 = vmatpush1.bf16.msra.mxu0 0
        %1573 = vmatprep.subr.bf16.mxu0 0
        %1574 = vmatpush1.bf16.msra.mxu0 0
        %1575 = vmatprep.subr.bf16.mxu0 0
        %1576 = vmatpush1.bf16.msra.mxu0 0
        %1577 = vmatprep.subr.bf16.mxu0 0
        %1578 = vmatpush1.bf16.msra.mxu0 0
        %1579 = vmatprep.subr.bf16.mxu0 0
        %1580 = vmatpush1.bf16.msra.mxu0 0
        %1581 = vmatprep.subr.bf16.mxu0 0
        %1582 = vmatpush1.bf16.msra.mxu0 0
        %1583 = vmatprep.subr.bf16.mxu0 0
        %1584 = vmatpush1.bf16.msra.mxu0 0
        %1585 = vmatprep.subr.bf16.mxu0 0
        %1586 = vmatpush1.bf16.msra.mxu0 0
        %1587 = vmatprep.subr.bf16.mxu0 0
        %1588 = vmatpush1.bf16.msra.mxu0 0
        %1589 = vmatprep.subr.bf16.mxu0 0
        %1590 = vmatpush1.bf16.msra.mxu0 0
        %1591 = vmatprep.subr.bf16.mxu0 0
        %1592 = vmatpush1.bf16.msra.mxu0 0
        %1593 = vmatprep.subr.bf16.mxu0 0
        %1594 = vmatpush1.bf16.msra.mxu0 0
        %1595 = vmatprep.subr.bf16.mxu0 0
        %1596 = vmatpush1.bf16.msra.mxu0 0
        %1597 = vmatprep.subr.bf16.mxu0 0
        %1598 = vmatpush1.bf16.msra.mxu0 0
        %1599 = vmatprep.mubr.bf16.mxu0 0
        %1600 = vmatmul.mubr.bf16.gmra.mrb[0].mxu0 %v1562
        %v1601 = vpop.f32.mrb[0].mxu0
        %v1602 = vadd.f32 0.0, %v1601
        %v1603 = vpop.f32.mrb[0].mxu0
        %v1604 = vpop.f32.mrb[0].mxu0
        %v1605 = vpop.f32.mrb[0].mxu0
        %1606 = vdwg.mxu0
        %v1608 = vsel %vm1271, %v1512, 0
        %v1611 = vsel %vm1517, %v1204, 0
        %1613 = vmatprep.subr.bf16.mxu0 0
        %1614 = vmatpush1.bf16.msra.mxu0 %v1611
        %1615 = vmatprep.subr.bf16.mxu0 0
        %1616 = vmatpush1.bf16.msra.mxu0 0
        %1617 = vmatprep.subr.bf16.mxu0 0
        %1618 = vmatpush1.bf16.msra.mxu0 0
        %1619 = vmatprep.subr.bf16.mxu0 0
        %1620 = vmatpush1.bf16.msra.mxu0 0
        %1621 = vmatprep.subr.bf16.mxu0 0
        %1622 = vmatpush1.bf16.msra.mxu0 0
        %1623 = vmatprep.subr.bf16.mxu0 0
        %1624 = vmatpush1.bf16.msra.mxu0 0
        %1625 = vmatprep.subr.bf16.mxu0 0
        %1626 = vmatpush1.bf16.msra.mxu0 0
        %1627 = vmatprep.subr.bf16.mxu0 0
        %1628 = vmatpush1.bf16.msra.mxu0 0
        %1629 = vmatprep.subr.bf16.mxu0 0
        %1630 = vmatpush1.bf16.msra.mxu0 0
        %1631 = vmatprep.subr.bf16.mxu0 0
        %1632 = vmatpush1.bf16.msra.mxu0 0
        %1633 = vmatprep.subr.bf16.mxu0 0
        %1634 = vmatpush1.bf16.msra.mxu0 0
        %1635 = vmatprep.subr.bf16.mxu0 0
        %1636 = vmatpush1.bf16.msra.mxu0 0
        %1637 = vmatprep.subr.bf16.mxu0 0
        %1638 = vmatpush1.bf16.msra.mxu0 0
        %1639 = vmatprep.subr.bf16.mxu0 0
        %1640 = vmatpush1.bf16.msra.mxu0 0
        %1641 = vmatprep.subr.bf16.mxu0 0
        %1642 = vmatpush1.bf16.msra.mxu0 0
        %1643 = vmatprep.subr.bf16.mxu0 0
        %1644 = vmatpush1.bf16.msra.mxu0 0
        %1645 = vmatprep.mubr.bf16.mxu0 0
        %1646 = vmatmul.mubr.bf16.gmra.mrb[0].mxu0 %v1608
        %v1647 = vpop.f32.mrb[0].mxu0
        %v1648 = vadd.f32 0.0, %v1647
        %v1649 = vpop.f32.mrb[0].mxu0
        %v1650 = vpop.f32.mrb[0].mxu0
        %v1651 = vpop.f32.mrb[0].mxu0
        %1652 = vdwg.mxu0
        %v1654 = vsel %vm1271, %v1513, 0
        %v1657 = vsel %vm1517, %v1270, 0
        %1659 = vmatprep.subr.bf16.mxu0 0
        %1660 = vmatpush1.bf16.msra.mxu0 %v1657
        %1661 = vmatprep.subr.bf16.mxu0 0
        %1662 = vmatpush1.bf16.msra.mxu0 0
        %1663 = vmatprep.subr.bf16.mxu0 0
        %1664 = vmatpush1.bf16.msra.mxu0 0
        %1665 = vmatprep.subr.bf16.mxu0 0
        %1666 = vmatpush1.bf16.msra.mxu0 0
        %1667 = vmatprep.subr.bf16.mxu0 0
        %1668 = vmatpush1.bf16.msra.mxu0 0
        %1669 = vmatprep.subr.bf16.mxu0 0
        %1670 = vmatpush1.bf16.msra.mxu0 0
        %1671 = vmatprep.subr.bf16.mxu0 0
        %1672 = vmatpush1.bf16.msra.mxu0 0
        %1673 = vmatprep.subr.bf16.mxu0 0
        %1674 = vmatpush1.bf16.msra.mxu0 0
        %1675 = vmatprep.subr.bf16.mxu0 0
        %1676 = vmatpush1.bf16.msra.mxu0 0
        %1677 = vmatprep.subr.bf16.mxu0 0
        %1678 = vmatpush1.bf16.msra.mxu0 0
        %1679 = vmatprep.subr.bf16.mxu0 0
        %1680 = vmatpush1.bf16.msra.mxu0 0
        %1681 = vmatprep.subr.bf16.mxu0 0
        %1682 = vmatpush1.bf16.msra.mxu0 0
        %1683 = vmatprep.subr.bf16.mxu0 0
        %1684 = vmatpush1.bf16.msra.mxu0 0
        %1685 = vmatprep.subr.bf16.mxu0 0
        %1686 = vmatpush1.bf16.msra.mxu0 0
        %1687 = vmatprep.subr.bf16.mxu0 0
        %1688 = vmatpush1.bf16.msra.mxu0 0
        %1689 = vmatprep.subr.bf16.mxu0 0
        %1690 = vmatpush1.bf16.msra.mxu0 0
        %1691 = vmatprep.mubr.bf16.mxu0 0
        %1692 = vmatmul.mubr.bf16.gmra.mrb[0].mxu0 %v1654
        %v1693 = vpop.f32.mrb[0].mxu0
        %v1694 = vadd.f32 0.0, %v1693
        %v1695 = vpop.f32.mrb[0].mxu0
        %v1696 = vpop.f32.mrb[0].mxu0
        %v1697 = vpop.f32.mrb[0].mxu0
        %1698 = vdwg.mxu0
        %v1699 = vpack.c.bf16 %v1556, %v1556
        %v1700 = vpack.c.bf16 %v1602, %v1602
        %v1701 = vpack.c.bf16 %v1648, %v1648
        %v1702 = vpack.c.bf16 %v1694, %v1694
        %1704 = vrot.lane.b32.xlu0 %v1700, 8
        %v1705 = vpop.permute.xlu0 %1704
        %1707 = vrot.lane.b32.xlu0 %v1701, 16
        %v1708 = vpop.permute.xlu0 %1707
        %1710 = vrot.lane.b32.xlu0 %v1702, 24
        %v1711 = vpop.permute.xlu0 %1710
        %v1714 = vsel %vm1271, %v1699, %v1705
        %vm1715 = vcmask 130048
        %v1717 = vsel %vm1715, %v1714, %v1708
        %vm1718 = vcmask 195584
        %v1720 = vsel %vm1718, %v1717, %v1711
        %v1721 = vld [vmem:[%s3] sm:$0xf]
        %v1722 = vld [vmem:[%s3 + $0x4] sm:$0xf]
        %v1723 = vld [vmem:[%s3 + $0x8] sm:$0xf]
        %v1724 = vld [vmem:[%s3 + $0xc] sm:$0xf]
        %v1725 = vld [vmem:[%s4] sm:$0x1]
        %v1727 = vlaneseq
        %v1728 = vshrl.u32 %v1727, 7
        %v1729 = vsub.s32 0, %v1728
        %v1730 = vrot.slane %v1725, %v1729
        %v1736 = vunpack.c.l.b16 %v1721
        %v1737 = vunpack.c.l.b16 %v1722
        %v1738 = vunpack.c.l.b16 %v1723
        %v1739 = vunpack.c.l.b16 %v1724
        %v1740 = vpack.c.b16 %v1737, %v1736
        %v1741 = vpack.c.b16 %v1739, %v1738
        %v1744 = vsel %vm500, %v1720, 0
        %1746 = vmatprep.subr.bf16.mxu0 0
        %1747 = vmatpush1.bf16.msra.mxu0 %v1740
        %1748 = vmatprep.subr.bf16.mxu0 0
        %1749 = vmatpush1.bf16.msra.mxu0 %v1741
        %1750 = vmatprep.subr.bf16.mxu0 0
        %1751 = vmatpush1.bf16.msra.mxu0 0
        %1752 = vmatprep.subr.bf16.mxu0 0
        %1753 = vmatpush1.bf16.msra.mxu0 0
        %1754 = vmatprep.subr.bf16.mxu0 0
        %1755 = vmatpush1.bf16.msra.mxu0 0
        %1756 = vmatprep.subr.bf16.mxu0 0
        %1757 = vmatpush1.bf16.msra.mxu0 0
        %1758 = vmatprep.subr.bf16.mxu0 0
        %1759 = vmatpush1.bf16.msra.mxu0 0
        %1760 = vmatprep.subr.bf16.mxu0 0
        %1761 = vmatpush1.bf16.msra.mxu0 0
        %1762 = vmatprep.subr.bf16.mxu0 0
        %1763 = vmatpush1.bf16.msra.mxu0 0
        %1764 = vmatprep.subr.bf16.mxu0 0
        %1765 = vmatpush1.bf16.msra.mxu0 0
        %1766 = vmatprep.subr.bf16.mxu0 0
        %1767 = vmatpush1.bf16.msra.mxu0 0
        %1768 = vmatprep.subr.bf16.mxu0 0
        %1769 = vmatpush1.bf16.msra.mxu0 0
        %1770 = vmatprep.subr.bf16.mxu0 0
        %1771 = vmatpush1.bf16.msra.mxu0 0
        %1772 = vmatprep.subr.bf16.mxu0 0
        %1773 = vmatpush1.bf16.msra.mxu0 0
        %1774 = vmatprep.subr.bf16.mxu0 0
        %1775 = vmatpush1.bf16.msra.mxu0 0
        %1776 = vmatprep.subr.bf16.mxu0 0
        %1777 = vmatpush1.bf16.msra.mxu0 0
        %1778 = vmatprep.mubr.bf16.mxu0 0
        %1779 = vmatmul.mubr.bf16.gmra.mrb[0].mxu0 %v1744
        %v1780 = vpop.f32.mrb[0].mxu0
        %v1781 = vadd.f32 %v1730, %v1780
        %v1782 = vpop.f32.mrb[0].mxu0
        %v1783 = vpop.f32.mrb[0].mxu0
        %v1784 = vpop.f32.mrb[0].mxu0
        %1785 = vdwg.mxu0
        %v1786 = vadd.f32 %v475, %v1781
        %v1787 = vld [vmem:[%s9] sm:$0x1]
        %v1788 = vld [vmem:[%s10] sm:$0x1]
        %v1789 = vsel %vm500, %v1786, 0.0
        %1790 = vadd.xlane.f32.xlu0 %v1789
        %v1791 = vpop.xlane.xlu0 %1790
        %v1792 = vrcp.pop 32.0
        %v1793 = vmul.f32 %v1791, %v1792
        %v1794 = vsub.f32 %v1786, %v1793
        %v1795 = vmul.f32 %v1794, %v1794
        %v1796 = vsel %vm500, %v1795, 0.0
        %1797 = vadd.xlane.f32.xlu0 %v1796
        %v1798 = vpop.xlane.xlu0 %1797
        %v1799 = vmul.f32 %v1798, %v1792
        %v1800 = vadd.f32 %v1799, 1e-05
        %v1801 = vrsqrt.pop %v1800
        %v1802 = vmul.f32 %v1794, %v1801
        %v1804 = vlaneseq
        %v1805 = vshrl.u32 %v1804, 7
        %v1806 = vsub.s32 0, %v1805
        %v1807 = vrot.slane %v1787, %v1806
        %v1809 = vmul.f32 %v1802, %v1807
        %v1811 = vlaneseq
        %v1812 = vshrl.u32 %v1811, 7
        %v1813 = vsub.s32 0, %v1812
        %v1814 = vrot.slane %v1788, %v1813
        %v1816 = vadd.f32 %v1809, %v1814
        %v1817 = vpack.c.bf16 %v1816, %v1816
        %v1818 = vld [vmem:[%s5] sm:$0xf]
        %v1819 = vld [vmem:[%s5 + $0x4] sm:$0xf]
        %v1820 = vld [vmem:[%s5 + $0x8] sm:$0xf]
        %v1821 = vld [vmem:[%s5 + $0xc] sm:$0xf]
        %v1822 = vld [vmem:[%s6] sm:$0x1]
        %v1824 = vlaneseq
        %v1825 = vshrl.u32 %v1824, 7
        %v1826 = vsub.s32 0, %v1825
        %v1827 = vrot.slane %v1822, %v1826
        %v1833 = vunpack.c.l.b16 %v1818
        %v1834 = vunpack.c.l.b16 %v1819
        %v1835 = vunpack.c.l.b16 %v1820
        %v1836 = vunpack.c.l.b16 %v1821
        %v1837 = vpack.c.b16 %v1834, %v1833
        %v1838 = vpack.c.b16 %v1836, %v1835
        %v1842 = vsel %vm500, %v1817, 0
        %1844 = vmatprep.subr.bf16.mxu0 0
        %1845 = vmatpush1.bf16.msra.mxu0 %v1837
        %1846 = vmatprep.subr.bf16.mxu0 0
        %1847 = vmatpush1.bf16.msra.mxu0 %v1838
        %1848 = vmatprep.subr.bf16.mxu0 0
        %1849 = vmatpush1.bf16.msra.mxu0 0
        %1850 = vmatprep.subr.bf16.mxu0 0
        %1851 = vmatpush1.bf16.msra.mxu0 0
        %1852 = vmatprep.subr.bf16.mxu0 0
        %1853 = vmatpush1.bf16.msra.mxu0 0
        %1854 = vmatprep.subr.bf16.mxu0 0
        %1855 = vmatpush1.bf16.msra.mxu0 0
        %1856 = vmatprep.subr.bf16.mxu0 0
        %1857 = vmatpush1.bf16.msra.mxu0 0
        %1858 = vmatprep.subr.bf16.mxu0 0
        %1859 = vmatpush1.bf16.msra.mxu0 0
        %1860 = vmatprep.subr.bf16.mxu0 0
        %1861 = vmatpush1.bf16.msra.mxu0 0
        %1862 = vmatprep.subr.bf16.mxu0 0
        %1863 = vmatpush1.bf16.msra.mxu0 0
        %1864 = vmatprep.subr.bf16.mxu0 0
        %1865 = vmatpush1.bf16.msra.mxu0 0
        %1866 = vmatprep.subr.bf16.mxu0 0
        %1867 = vmatpush1.bf16.msra.mxu0 0
        %1868 = vmatprep.subr.bf16.mxu0 0
        %1869 = vmatpush1.bf16.msra.mxu0 0
        %1870 = vmatprep.subr.bf16.mxu0 0
        %1871 = vmatpush1.bf16.msra.mxu0 0
        %1872 = vmatprep.subr.bf16.mxu0 0
        %1873 = vmatpush1.bf16.msra.mxu0 0
        %1874 = vmatprep.subr.bf16.mxu0 0
        %1875 = vmatpush1.bf16.msra.mxu0 0
        %1876 = vmatprep.mubr.bf16.mxu0 0
        %1877 = vmatmul.mubr.bf16.gmra.mrb[0].mxu0 %v1842
        %v1878 = vpop.f32.mrb[0].mxu0
        %v1879 = vadd.f32 %v1827, %v1878
        %v1880 = vpop.f32.mrb[0].mxu0
        %v1881 = vpop.f32.mrb[0].mxu0
        %v1882 = vpop.f32.mrb[0].mxu0
        %1883 = vdwg.mxu0
        %v1884 = vmax.f32 %v1879, 0.0
        %v1885 = vpack.c.bf16 %v1884, %v1884
        %v1886 = vld [vmem:[%s7] sm:$0xf]
        %v1887 = vld [vmem:[%s7 + $0x4] sm:$0xf]
        %v1888 = vld [vmem:[%s7 + $0x8] sm:$0xf]
        %v1889 = vld [vmem:[%s7 + $0xc] sm:$0xf]
        %v1890 = vld [vmem:[%s7 + $0x10] sm:$0xf]
        %v1891 = vld [vmem:[%s7 + $0x14] sm:$0xf]
        %v1892 = vld [vmem:[%s7 + $0x18] sm:$0xf]
        %v1893 = vld [vmem:[%s7 + $0x1c] sm:$0xf]
        %v1894 = vld [vmem:[%s8] sm:$0x1]
        %v1896 = vlaneseq
        %v1897 = vshrl.u32 %v1896, 7
        %v1898 = vsub.s32 0, %v1897
        %v1899 = vrot.slane %v1894, %v1898
        %v1909 = vunpack.c.l.b16 %v1886
        %v1910 = vunpack.c.l.b16 %v1887
        %v1911 = vunpack.c.l.b16 %v1888
        %v1912 = vunpack.c.l.b16 %v1889
        %v1913 = vunpack.c.l.b16 %v1890
        %v1914 = vunpack.c.l.b16 %v1891
        %v1915 = vunpack.c.l.b16 %v1892
        %v1916 = vunpack.c.l.b16 %v1893
        %v1917 = vpack.c.b16 %v1910, %v1909
        %v1918 = vpack.c.b16 %v1912, %v1911
        %v1919 = vpack.c.b16 %v1914, %v1913
        %v1920 = vpack.c.b16 %v1916, %v1915
        %vm1925 = vcmask 523264
        %v1927 = vsel %vm1925, %v1885, 0
        %1929 = vmatprep.subr.bf16.mxu0 0
        %1930 = vmatpush1.bf16.msra.mxu0 %v1917
        %1931 = vmatprep.subr.bf16.mxu0 0
        %1932 = vmatpush1.bf16.msra.mxu0 %v1918
        %1933 = vmatprep.subr.bf16.mxu0 0
        %1934 = vmatpush1.bf16.msra.mxu0 %v1919
        %1935 = vmatprep.subr.bf16.mxu0 0
        %1936 = vmatpush1.bf16.msra.mxu0 %v1920
        %1937 = vmatprep.subr.bf16.mxu0 0
        %1938 = vmatpush1.bf16.msra.mxu0 0
        %1939 = vmatprep.subr.bf16.mxu0 0
        %1940 = vmatpush1.bf16.msra.mxu0 0
        %1941 = vmatprep.subr.bf16.mxu0 0
        %1942 = vmatpush1.bf16.msra.mxu0 0
        %1943 = vmatprep.subr.bf16.mxu0 0
        %1944 = vmatpush1.bf16.msra.mxu0 0
        %1945 = vmatprep.subr.bf16.mxu0 0
        %1946 = vmatpush1.bf16.msra.mxu0 0
        %1947 = vmatprep.subr.bf16.mxu0 0
        %1948 = vmatpush1.bf16.msra.mxu0 0
        %1949 = vmatprep.subr.bf16.mxu0 0
        %1950 = vmatpush1.bf16.msra.mxu0 0
        %1951 = vmatprep.subr.bf16.mxu0 0
        %1952 = vmatpush1.bf16.msra.mxu0 0
        %1953 = vmatprep.subr.bf16.mxu0 0
        %1954 = vmatpush1.bf16.msra.mxu0 0
        %1955 = vmatprep.subr.bf16.mxu0 0
        %1956 = vmatpush1.bf16.msra.mxu0 0
        %1957 = vmatprep.subr.bf16.mxu0 0
        %1958 = vmatpush1.bf16.msra.mxu0 0
        %1959 = vmatprep.subr.bf16.mxu0 0
        %1960 = vmatpush1.bf16.msra.mxu0 0
        %1961 = vmatprep.mubr.bf16.mxu0 0
        %1962 = vmatmul.mubr.bf16.gmra.mrb[0].mxu0 %v1927
        %v1963 = vpop.f32.mrb[0].mxu0
        %v1964 = vadd.f32 %v1899, %v1963
        %v1965 = vpop.f32.mrb[0].mxu0
        %v1966 = vpop.f32.mrb[0].mxu0
        %v1967 = vpop.f32.mrb[0].mxu0
        %1968 = vdwg.mxu0
        %v1969 = vadd.f32 %v1816, %v1964
        %v1970 = vld [vmem:[%s11] sm:$0x1]
        %v1971 = vld [vmem:[%s12] sm:$0x1]
        %v1972 = vsel %vm500, %v1969, 0.0
        %1973 = vadd.xlane.f32.xlu0 %v1972
        %v1974 = vpop.xlane.xlu0 %1973
        %v1975 = vmul.f32 %v1974, %v1792
        %v1976 = vsub.f32 %v1969, %v1975
        %v1977 = vmul.f32 %v1976, %v1976
        %v1978 = vsel %vm500, %v1977, 0.0
        %1979 = vadd.xlane.f32.xlu0 %v1978
        %v1980 = vpop.xlane.xlu0 %1979
        %v1981 = vmul.f32 %v1980, %v1792
        %v1982 = vadd.f32 %v1981, 1e-05
        %v1983 = vrsqrt.pop %v1982
        %v1984 = vmul.f32 %v1976, %v1983
        %v1986 = vlaneseq
        %v1987 = vshrl.u32 %v1986, 7
        %v1988 = vsub.s32 0, %v1987
        %v1989 = vrot.slane %v1970, %v1988
        %v1991 = vmul.f32 %v1984, %v1989
        %v1993 = vlaneseq
        %v1994 = vshrl.u32 %v1993, 7
        %v1995 = vsub.s32 0, %v1994
        %v1996 = vrot.slane %v1971, %v1995
        %v1998 = vadd.f32 %v1991, %v1996
        %1999 = vst.msk [vmem:[%s462] sm:$0xff] %vm500, %v1998
        %s2000 = sand.u32 %s318, 1
        %s2001 = scalar_lea.sflag [#allocation3], %s2000
        %s2002 = sand.u32 %s318, 1
        %s2003 = smul.addr %s2002, 8
        %s2004 = scalar_lea.vmem [#allocation2], %s2003
        %s2005 = sand.u32 %s344, 1
        %s2006 = scalar_lea.sflag [#allocation5], %s2005
        %s2007 = sand.u32 %s344, 1
        %s2008 = smul.addr %s2007, 8
        %s2009 = scalar_lea.vmem [#allocation4], %s2008
        // Predicated region
        $region73: #{tpu_custom_call.1} parent=71 // pred_check
          %p2010 = pneg %p328
        $region74: #{tpu_custom_call.1} parent=71 // pred_check_branch
          %2012 = sbr.rel (%p2010) target = $region76
        $region75: #{tpu_custom_call.1} parent=71 // pred_region
          %s2014 = ssub.s32 128, 128
          %2015 = vsyncadd %s2001, %s2014
          %s2016 = smul.addr %s32, 128
          %s2017 = scalar_lea.hbm %s13, %s2016
          %s2019 = sshll.u32 %s2004, 4
          %s2020 = int_to_ptr.vmem [resolvable:$true] %s2019
          %2022 = dma.vmem_to_hbm [thread:$0]  %s2020, 128, %s2017, %s2001
        $region76: #{tpu_custom_call.1} parent=71 // pred_fallthru
          _
        // Predicated region
        $region77: #{tpu_custom_call.1} parent=71 // pred_check
          %p2023 = pneg %p354
        $region78: #{tpu_custom_call.1} parent=71 // pred_check_branch
          %2025 = sbr.rel (%p2023) target = $region80
        $region79: #{tpu_custom_call.1} parent=71 // pred_region
          %s2027 = ssub.s32 128, 128
          %2028 = vsyncadd %s2006, %s2027
          %s2029 = smul.addr %s32, 128
          %s2030 = scalar_lea.hbm %s14, %s2029
          %s2032 = sshll.u32 %s2009, 4
          %s2033 = int_to_ptr.vmem [resolvable:$true] %s2032
          %2035 = dma.vmem_to_hbm [thread:$0]  %s2033, 128, %s2030, %s2006
        $region80: #{tpu_custom_call.1} parent=71 // pred_fallthru
          _
      $region72: #{tpu_custom_call.1} parent=5 // pred_fallthru
        _
      %p2036 = scmp.le.s32.totalorder 2, %s27
      // Predicated region
      $region81: #{tpu_custom_call.1} parent=5 // pred_check
        %p2037 = pneg %p2036
      $region82: #{tpu_custom_call.1} parent=5 // pred_check_branch
        %2039 = sbr.rel (%p2037) target = $region84
      $region83: #{tpu_custom_call.1} parent=5 // pred_region
        %s2040 = ssub.s32 %s27, 2
        // Predicated region
        $region85: #{tpu_custom_call.1} parent=83 // pred_check
          %p2041 = pneg %p334
        $region86: #{tpu_custom_call.1} parent=83 // pred_check_branch
          %2043 = sbr.rel (%p2041) target = $region88
        $region87: #{tpu_custom_call.1} parent=83 // pred_region
          %s2044 = sand.u32 %s319, 1
          %s2045 = scalar_lea.sflag [#allocation3], %s2044
          %s2046 = sand.u32 %s319, 1
          %s2047 = smul.addr %s2046, 8
          %s2048 = scalar_lea.vmem [#allocation2], %s2047
          %2049 = dma.done %s2045, 128
        $region88: #{tpu_custom_call.1} parent=83 // pred_fallthru
          _
        // Predicated region
        $region89: #{tpu_custom_call.1} parent=83 // pred_check
          %p2050 = pneg %p360
        $region90: #{tpu_custom_call.1} parent=83 // pred_check_branch
          %2052 = sbr.rel (%p2050) target = $region92
        $region91: #{tpu_custom_call.1} parent=83 // pred_region
          %s2053 = sand.u32 %s345, 1
          %s2054 = scalar_lea.sflag [#allocation5], %s2053
          %s2055 = sand.u32 %s345, 1
          %s2056 = smul.addr %s2055, 8
          %s2057 = scalar_lea.vmem [#allocation4], %s2056
          %2058 = dma.done %s2054, 128
        $region92: #{tpu_custom_call.1} parent=83 // pred_fallthru
          _
      $region84: #{tpu_custom_call.1} parent=5 // pred_fallthru
        _
    $region6: #{tpu_custom_call.1} parent=1 // loop_footer
      %s31 = sadd.s32 1, %s27
    $region7: #{tpu_custom_call.1} parent=1 // loop_footer_branch
      %26 = sbr.rel target = $region3
    $region8: #{tpu_custom_call.1} parent=1 // loop_exit
      _
    %2059 = vsyncpa [#allocation3], 1
    %s2060 = scalar_lea.sflag [#allocation3], 1
    %2061 = vsyncpa %s2060, 1
    %2062 = vsyncpa [#allocation5], 1
    %s2063 = scalar_lea.sflag [#allocation5], 1
    %2064 = vsyncpa %s2063, 1

</llo_original>
